<compile_context>
chip_gen: v7x
topology: tpu7x:2x2x1
jax: 0.10.0
libtpu: 0.0.40
codegen_flags: <defaults>
</compile_context>

<pallas_src>
import math

import jax
import jax.numpy as jnp
from jax import lax
from jax.experimental import pallas as pl
from jax.experimental.pallas import tpu as pltpu

# ----- small BERT config (consistent with the module's hidden_size usage) -----
VOCAB = 128
MAX_POS = 64
TYPE_VOCAB = 2
HIDDEN = 128
NUM_HEADS = 4
HEAD_DIM = HIDDEN // NUM_HEADS
INTERMEDIATE = 256
NUM_LAYERS = 2
N_CLASS = 3
LN_EPS = 1e-12
LANE = 128       # lane-padded width of the tiny task-head output
POOL_PAD = 8     # sublane-padded rows of the per-batch logits block


# ------------------------------ in-kernel helpers ------------------------------
def _layer_norm(h, g, b):
    mu = jnp.mean(h, axis=-1, keepdims=True)
    var = jnp.mean(jnp.square(h - mu), axis=-1, keepdims=True)
    return (h - mu) * lax.rsqrt(var + LN_EPS) * g + b


def _gelu(x):
    # tanh-approx GELU ("gelu_new"); exact erf GELU differs at ~1e-3 level.
    c = math.sqrt(2.0 / math.pi)
    return 0.5 * x * (1.0 + jnp.tanh(c * (x + 0.044715 * x * x * x)))


# --------------------------- fused SAN-BERT kernel -----------------------------
def _san_bert_kernel(emb_ref, bias_ref, hmask_ref, embg_ref, embb_ref,
                     wqkv_ref, bqkv_ref, wo_ref, bo_ref, ln1g_ref, ln1b_ref,
                     w1_ref, b1_ref, w2_ref, b2_ref, ln2g_ref, ln2b_ref,
                     pw_ref, pb_ref, owp_ref, obp_ref,
                     logits_ref, x_ref):
    layer = pl.program_id(1)

    # layer step 0 of each batch: embedding LayerNorm seeds the resident scratch.
    @pl.when(layer == 0)
    def _():
        x_ref[...] = _layer_norm(emb_ref[...], embg_ref[...], embb_ref[...])

    x = x_ref[...]                                   # (S, H) f32, resident

    # ---- fused Q/K/V projection: one [H, 3H] matmul (bf16 in, f32 accumulate) ----
    qkv = jnp.dot(x.astype(jnp.bfloat16), wqkv_ref[0],
                  preferred_element_type=jnp.float32) + bqkv_ref[0]
    q = qkv[:, 0 * HIDDEN:1 * HIDDEN]
    k = qkv[:, 1 * HIDDEN:2 * HIDDEN]
    v = qkv[:, 2 * HIDDEN:3 * HIDDEN]

    # ---- block-diagonal multi-head attention (all heads in one pass) ----
    # hmask[r, j] = 1 iff lane j belongs to head r // S.
    hmask = hmask_ref[...]                           # (NH*S, H) f32 0/1

    def head_stack(a):                               # (S, H) -> (NH*S, H)
        return jnp.concatenate([a] * NUM_HEADS, axis=0) * hmask

    k_blk = head_stack(k).astype(jnp.bfloat16)       # (NH*S, H)
    v_blk = head_stack(v).astype(jnp.bfloat16)       # (NH*S, H)

    # ONE scores matmul for all heads: (S, H) x (NH*S, H)^T -> (S, NH*S);
    # column h*S + s2 is head h's score against key s2 (no cross-head terms,
    # the head mask on K zeroes other heads' lanes in the contraction).
    s = lax.dot_general(q.astype(jnp.bfloat16), k_blk,
                        (((1,), (1,)), ((), ())),
                        preferred_element_type=jnp.float32)
    s = s * (1.0 / math.sqrt(HEAD_DIM)) + bias_ref[0]
    # Global row max is a per-row constant shift, so per-head softmax is unchanged.
    s = s - jnp.max(s, axis=-1, keepdims=True)
    p = jnp.exp(s)                                   # (S, NH*S) unnormalized

    # per-head denominators, broadcast onto each head's lane block of ctx.
    den = jnp.dot(p, hmask, preferred_element_type=jnp.float32)       # (S, H)
    ctx = jnp.dot(p.astype(jnp.bfloat16), v_blk,
                  preferred_element_type=jnp.float32)                 # (S, H)
    ctx = ctx * pl.reciprocal(den, approx=True)

    # ---- attention output projection + residual + LayerNorm ----
    attn = jnp.dot(ctx.astype(jnp.bfloat16), wo_ref[0],
                   preferred_element_type=jnp.float32) + bo_ref[0]
    x = _layer_norm(attn + x, ln1g_ref[0], ln1b_ref[0])

    # ---- feed-forward: GELU(x W1 + b1) W2 + b2, residual, LayerNorm ----
    hmid = jnp.dot(x.astype(jnp.bfloat16), w1_ref[0],
                   preferred_element_type=jnp.float32) + b1_ref[0]
    hmid = _gelu(hmid)
    ffn = jnp.dot(hmid.astype(jnp.bfloat16), w2_ref[0],
                  preferred_element_type=jnp.float32) + b2_ref[0]
    x = _layer_norm(ffn + x, ln2g_ref[0], ln2b_ref[0])
    x_ref[...] = x

    # last layer step: BERT pooler (tanh dense) + task head on the CLS row only.
    @pl.when(layer == pl.num_programs(1) - 1)
    def _():
        cls = x[0:1, :]                              # (1, H) CLS row of this batch
        pooled = jnp.tanh(
            jnp.dot(cls.astype(jnp.bfloat16), pw_ref[...],
                    preferred_element_type=jnp.float32) + pb_ref[...])
        logit = (jnp.dot(pooled.astype(jnp.bfloat16), owp_ref[...],
                         preferred_element_type=jnp.float32) + obp_ref[...])
        logits_ref[...] = jnp.broadcast_to(logit, logits_ref.shape)


# ------------------------- parameter initialization ---------------------------
def init_params(key, init_ratio=1.0):
    std = 0.02 * init_ratio  # mirrors SANBertNetwork._my_init
    n_keys = 3 + NUM_LAYERS * 6 + 2
    keys = iter(jax.random.split(key, n_keys))

    def nrm(shape):
        return std * jax.random.normal(next(keys), shape, jnp.float32)

    params = {
        "word_emb": nrm((VOCAB, HIDDEN)),
        "pos_emb": nrm((MAX_POS, HIDDEN)),
        "type_emb": nrm((TYPE_VOCAB, HIDDEN)),
        "emb_ln_g": jnp.ones((HIDDEN,), jnp.float32),
        "emb_ln_b": jnp.zeros((HIDDEN,), jnp.float32),
        "layers": [],
        "pooler_b": jnp.zeros((HIDDEN,), jnp.float32),
        "out_b": jnp.zeros((N_CLASS,), jnp.float32),
    }
    for _ in range(NUM_LAYERS):
        layer = {
            "wq": nrm((HIDDEN, HIDDEN)), "bq": jnp.zeros((HIDDEN,), jnp.float32),
            "wk": nrm((HIDDEN, HIDDEN)), "bk": jnp.zeros((HIDDEN,), jnp.float32),
            "wv": nrm((HIDDEN, HIDDEN)), "bv": jnp.zeros((HIDDEN,), jnp.float32),
            "wo": nrm((HIDDEN, HIDDEN)), "bo": jnp.zeros((HIDDEN,), jnp.float32),
            "ln1_g": jnp.ones((HIDDEN,), jnp.float32),
            "ln1_b": jnp.zeros((HIDDEN,), jnp.float32),
            "w1": nrm((HIDDEN, INTERMEDIATE)),
            "b1": jnp.zeros((INTERMEDIATE,), jnp.float32),
            "w2": nrm((INTERMEDIATE, HIDDEN)),
            "b2": jnp.zeros((HIDDEN,), jnp.float32),
            "ln2_g": jnp.ones((HIDDEN,), jnp.float32),
            "ln2_b": jnp.zeros((HIDDEN,), jnp.float32),
        }
        params["layers"].append(layer)
    params["pooler_w"] = nrm((HIDDEN, HIDDEN))
    params["out_w"] = nrm((HIDDEN, N_CLASS))
    return params


def prepare_params(params):
    """Stack per-layer weights on a leading layer axis (weight prefetch via the
    layer grid axis), cast matmul weights to bf16 (f32 accumulate in-kernel),
    and pad the tiny task head to a lane-dense 128-wide output."""
    L = params["layers"]
    bf = lambda a: a.astype(jnp.bfloat16)
    stack = lambda k: jnp.stack([layer[k] for layer in L])
    return {
        "word_emb": params["word_emb"],
        "pos_emb": params["pos_emb"],
        "type_emb": params["type_emb"],
        "emb_ln_g": params["emb_ln_g"].reshape(1, HIDDEN),
        "emb_ln_b": params["emb_ln_b"].reshape(1, HIDDEN),
        "wqkv": bf(jnp.stack([jnp.concatenate([l["wq"], l["wk"], l["wv"]], axis=1)
                              for l in L])),                        # (L, H, 3H)
        "bqkv": jnp.stack([jnp.concatenate([l["bq"], l["bk"], l["bv"]])[None, :]
                           for l in L]),                            # (L, 1, 3H)
        "wo": bf(stack("wo")),                                      # (L, H, H)
        "bo": stack("bo")[:, None, :],                              # (L, 1, H)
        "ln1_g": stack("ln1_g")[:, None, :],
        "ln1_b": stack("ln1_b")[:, None, :],
        "w1": bf(stack("w1")),                                      # (L, H, I)
        "b1": stack("b1")[:, None, :],
        "w2": bf(stack("w2")),                                      # (L, I, H)
        "b2": stack("b2")[:, None, :],
        "ln2_g": stack("ln2_g")[:, None, :],
        "ln2_b": stack("ln2_b")[:, None, :],
        "pooler_w": bf(params["pooler_w"]),
        "pooler_b": params["pooler_b"].reshape(1, HIDDEN),
        "out_w_pad": bf(jnp.zeros((HIDDEN, LANE), jnp.float32)
                        .at[:, :N_CLASS].set(params["out_w"])),
        "out_b_pad": jnp.zeros((1, LANE), jnp.float32)
                        .at[0, :N_CLASS].set(params["out_b"]),
    }


# ------------------------------- forward pass ----------------------------------
def san_bert_forward(prep, input_ids, token_type_ids, attention_mask):
    """SANBertNetwork.forward for a classification task (decoder_opt == 0)."""
    B, S = input_ids.shape

    # Embedding gathers stay in plain JAX (no clean Pallas gather win at this size).
    emb = (prep["word_emb"][input_ids]
           + prep["pos_emb"][jnp.arange(S)][None, :, :]
           + prep["type_emb"][token_type_ids]).reshape(B * S, HIDDEN)

    # additive padding mask laid out to match the head-stacked key axis h*S + s2
    pad_bias = (1.0 - attention_mask.astype(jnp.float32)) * -10000.0      # (B, S)
    bias = jnp.broadcast_to(jnp.tile(pad_bias, (1, NUM_HEADS))[:, None, :],
                            (B, S, NUM_HEADS * S))                        # (B,S,NH*S)

    # static head-lane mask: row r (= head r//S) keeps lanes [h*HD, (h+1)*HD)
    row_head = jnp.arange(NUM_HEADS * S, dtype=jnp.int32) // S
    lane_head = jnp.arange(HIDDEN, dtype=jnp.int32) // HEAD_DIM
    hmask = (row_head[:, None] == lane_head[None, :]).astype(jnp.float32)  # (NH*S,H)

    fix = lambda shape: pl.BlockSpec(shape, lambda b, l: (0,) * len(shape))
    perl = lambda arr: pl.BlockSpec((1,) + arr.shape[1:], lambda b, l: (l, 0, 0))

    logits_pad = pl.pallas_call(
        _san_bert_kernel,
        grid=(B, NUM_LAYERS),
        in_specs=[
            pl.BlockSpec((S, HIDDEN), lambda b, l: (b, 0)),               # embeddings
            pl.BlockSpec((1, S, NUM_HEADS * S), lambda b, l: (b, 0, 0)),  # attn bias
            fix((NUM_HEADS * S, HIDDEN)),                                 # head mask
            fix((1, HIDDEN)), fix((1, HIDDEN)),                           # emb LN g/b
            perl(prep["wqkv"]), perl(prep["bqkv"]),
            perl(prep["wo"]),   perl(prep["bo"]),
            perl(prep["ln1_g"]), perl(prep["ln1_b"]),
            perl(prep["w1"]),   perl(prep["b1"]),
            perl(prep["w2"]),   perl(prep["b2"]),
            perl(prep["ln2_g"]), perl(prep["ln2_b"]),
            fix((HIDDEN, HIDDEN)),                                        # pooler W
            fix((1, HIDDEN)),                                             # pooler b
            fix((HIDDEN, LANE)),                                          # head W (padded)
            fix((1, LANE)),                                               # head b (padded)
        ],
        out_specs=pl.BlockSpec((POOL_PAD, LANE), lambda b, l: (b, 0)),
        out_shape=jax.ShapeDtypeStruct((B * POOL_PAD, LANE), jnp.float32),
        scratch_shapes=[pltpu.VMEM((S, HIDDEN), jnp.float32)],  # per-batch activations
        compiler_params=pltpu.CompilerParams(
            dimension_semantics=("parallel", "arbitrary")),     # batches || , layers seq
    )(emb, bias, hmask, prep["emb_ln_g"], prep["emb_ln_b"],
      prep["wqkv"], prep["bqkv"], prep["wo"], prep["bo"],
      prep["ln1_g"], prep["ln1_b"], prep["w1"], prep["b1"],
      prep["w2"], prep["b2"], prep["ln2_g"], prep["ln2_b"],
      prep["pooler_w"], prep["pooler_b"], prep["out_w_pad"], prep["out_b_pad"])

    # keep row 0 of each batch's padded logits block, slice lane padding to n_class
    return logits_pad.reshape(B, POOL_PAD, LANE)[:, 0, :N_CLASS]


# ----------------------------------- main ---------------------------------------
if __name__ == "__main__":
    key = jax.random.PRNGKey(0)
    pkey, dkey1, dkey2 = jax.random.split(key, 3)

    params = init_params(pkey)
    prep = prepare_params(params)

    B, S = 2, 8
    input_ids = jax.random.randint(dkey1, (B, S), 0, VOCAB, dtype=jnp.int32)
    token_type_ids = jax.random.randint(dkey2, (B, S), 0, TYPE_VOCAB, dtype=jnp.int32)
    attention_mask = jnp.ones((B, S), dtype=jnp.int32)

    fwd = jax.jit(san_bert_forward)
    logits = fwd(prep, input_ids, token_type_ids, attention_mask)
    logits = jax.block_until_ready(logits)
    assert logits.shape == (B, N_CLASS)
    assert bool(jnp.all(jnp.isfinite(logits)))
    print("KERNEL_OK")
</pallas_src>

<mosaic_0001>
module attributes {stable_mosaic.version = 11 : i64} {
  func.func @_san_bert_kernel(%arg0: i32, %arg1: i32, %arg2: memref<8x128xf32, #tpu.memory_space<vmem>>, %arg3: memref<1x8x32xf32, #tpu.memory_space<vmem>>, %arg4: memref<32x128xf32, #tpu.memory_space<vmem>>, %arg5: memref<1x128xf32, #tpu.memory_space<vmem>>, %arg6: memref<1x128xf32, #tpu.memory_space<vmem>>, %arg7: memref<1x128x384xbf16, #tpu.memory_space<vmem>>, %arg8: memref<1x1x384xf32, #tpu.memory_space<vmem>>, %arg9: memref<1x128x128xbf16, #tpu.memory_space<vmem>>, %arg10: memref<1x1x128xf32, #tpu.memory_space<vmem>>, %arg11: memref<1x1x128xf32, #tpu.memory_space<vmem>>, %arg12: memref<1x1x128xf32, #tpu.memory_space<vmem>>, %arg13: memref<1x128x256xbf16, #tpu.memory_space<vmem>>, %arg14: memref<1x1x256xf32, #tpu.memory_space<vmem>>, %arg15: memref<1x256x128xbf16, #tpu.memory_space<vmem>>, %arg16: memref<1x1x128xf32, #tpu.memory_space<vmem>>, %arg17: memref<1x1x128xf32, #tpu.memory_space<vmem>>, %arg18: memref<1x1x128xf32, #tpu.memory_space<vmem>>, %arg19: memref<128x128xbf16, #tpu.memory_space<vmem>>, %arg20: memref<1x128xf32, #tpu.memory_space<vmem>>, %arg21: memref<128x128xbf16, #tpu.memory_space<vmem>>, %arg22: memref<1x128xf32, #tpu.memory_space<vmem>>, %arg23: memref<8x128xf32, #tpu.memory_space<vmem>>, %arg24: memref<8x128xf32, #tpu.memory_space<vmem>>) attributes {dimension_semantics = [#tpu.dimension_semantics<parallel>, #tpu.dimension_semantics<arbitrary>], iteration_bounds = array<i64: 2, 2>, scalar_prefetch = 0 : i64, scratch_operands = 1 : i64, tpu.core_type = #tpu.core_type<tc>, window_params = [{transform_indices = @transform_0, window_bounds = array<i64: 8, 128>}, {transform_indices = @transform_1, window_bounds = array<i64: 1, 8, 32>}, {pipeline_mode = #tpu.pipeline_mode<synchronous>, transform_indices = @transform_2, window_bounds = array<i64: 32, 128>}, {pipeline_mode = #tpu.pipeline_mode<synchronous>, transform_indices = @transform_3, window_bounds = array<i64: 1, 128>}, {pipeline_mode = #tpu.pipeline_mode<synchronous>, transform_indices = @transform_4, window_bounds = array<i64: 1, 128>}, {transform_indices = @transform_5, window_bounds = array<i64: 1, 128, 384>}, {transform_indices = @transform_6, window_bounds = array<i64: 1, 1, 384>}, {transform_indices = @transform_7, window_bounds = array<i64: 1, 128, 128>}, {transform_indices = @transform_8, window_bounds = array<i64: 1, 1, 128>}, {transform_indices = @transform_9, window_bounds = array<i64: 1, 1, 128>}, {transform_indices = @transform_10, window_bounds = array<i64: 1, 1, 128>}, {transform_indices = @transform_11, window_bounds = array<i64: 1, 128, 256>}, {transform_indices = @transform_12, window_bounds = array<i64: 1, 1, 256>}, {transform_indices = @transform_13, window_bounds = array<i64: 1, 256, 128>}, {transform_indices = @transform_14, window_bounds = array<i64: 1, 1, 128>}, {transform_indices = @transform_15, window_bounds = array<i64: 1, 1, 128>}, {transform_indices = @transform_16, window_bounds = array<i64: 1, 1, 128>}, {pipeline_mode = #tpu.pipeline_mode<synchronous>, transform_indices = @transform_17, window_bounds = array<i64: 128, 128>}, {pipeline_mode = #tpu.pipeline_mode<synchronous>, transform_indices = @transform_18, window_bounds = array<i64: 1, 128>}, {pipeline_mode = #tpu.pipeline_mode<synchronous>, transform_indices = @transform_19, window_bounds = array<i64: 128, 128>}, {pipeline_mode = #tpu.pipeline_mode<synchronous>, transform_indices = @transform_20, window_bounds = array<i64: 1, 128>}, {transform_indices = @transform_21, window_bounds = array<i64: 8, 128>}]} {
    %c0_i32 = arith.constant 0 : i32
    %0 = arith.cmpi eq, %arg1, %c0_i32 : i32
    %1 = arith.extui %0 : i1 to i32
    %c0_i32_0 = arith.constant 0 : i32
    %2 = arith.cmpi ne, %1, %c0_i32_0 : i32
    scf.if %2 {
      %c0_68 = arith.constant 0 : index
      %c0_69 = arith.constant 0 : index
      %134 = vector.load %arg2[%c0_68, %c0_69] : memref<8x128xf32, #tpu.memory_space<vmem>>, vector<8x128xf32>
      %c0_70 = arith.constant 0 : index
      %c0_71 = arith.constant 0 : index
      %135 = vector.load %arg5[%c0_70, %c0_71] : memref<1x128xf32, #tpu.memory_space<vmem>>, vector<1x128xf32>
      %c0_72 = arith.constant 0 : index
      %c0_73 = arith.constant 0 : index
      %136 = vector.load %arg6[%c0_72, %c0_73] : memref<1x128xf32, #tpu.memory_space<vmem>>, vector<1x128xf32>
      %cst_74 = arith.constant dense<0.000000e+00> : vector<8xf32>
      %137 = vector.multi_reduction <add>, %134, %cst_74 [1] : vector<8x128xf32> to vector<8xf32>
      %138 = vector.shape_cast %137 : vector<8xf32> to vector<8x1xf32>
      %cst_75 = arith.constant 1.280000e+02 : f32
      %139 = vector.broadcast %cst_75 : f32 to vector<8x1xf32>
      %140 = arith.divf %138, %139 : vector<8x1xf32>
      %141 = vector.broadcast %140 : vector<8x1xf32> to vector<8x128xf32>
      %142 = arith.subf %134, %141 : vector<8x128xf32>
      %143 = arith.mulf %142, %142 : vector<8x128xf32>
      %cst_76 = arith.constant dense<0.000000e+00> : vector<8xf32>
      %144 = vector.multi_reduction <add>, %143, %cst_76 [1] : vector<8x128xf32> to vector<8xf32>
      %145 = vector.shape_cast %144 : vector<8xf32> to vector<8x1xf32>
      %cst_77 = arith.constant 1.280000e+02 : f32
      %146 = vector.broadcast %cst_77 : f32 to vector<8x1xf32>
      %147 = arith.divf %145, %146 : vector<8x1xf32>
      %148 = vector.broadcast %140 : vector<8x1xf32> to vector<8x128xf32>
      %149 = arith.subf %134, %148 : vector<8x128xf32>
      %cst_78 = arith.constant 9.99999996E-13 : f32
      %150 = vector.broadcast %cst_78 : f32 to vector<8x1xf32>
      %151 = arith.addf %147, %150 : vector<8x1xf32>
      %152 = math.rsqrt %151 : vector<8x1xf32>
      %153 = vector.broadcast %152 : vector<8x1xf32> to vector<8x128xf32>
      %154 = arith.mulf %149, %153 : vector<8x128xf32>
      %155 = vector.broadcast %135 : vector<1x128xf32> to vector<8x128xf32>
      %156 = arith.mulf %154, %155 : vector<8x128xf32>
      %157 = vector.broadcast %136 : vector<1x128xf32> to vector<8x128xf32>
      %158 = arith.addf %156, %157 : vector<8x128xf32>
      %c0_79 = arith.constant 0 : index
      %c0_80 = arith.constant 0 : index
      %159 = vector.load %arg24[%c0_79, %c0_80] : memref<8x128xf32, #tpu.memory_space<vmem>>, vector<8x128xf32>
      tpu.vector_store %arg24[%c0_79, %c0_80], %158 {strides = array<i32>} : memref<8x128xf32, #tpu.memory_space<vmem>>, vector<8x128xf32>,
    } else {
    }
    %c0 = arith.constant 0 : index
    %c0_1 = arith.constant 0 : index
    %3 = vector.load %arg24[%c0, %c0_1] : memref<8x128xf32, #tpu.memory_space<vmem>>, vector<8x128xf32>
    %4 = arith.truncf %3 : vector<8x128xf32> to vector<8x128xbf16>
    %c0_2 = arith.constant 0 : index
    %c0_3 = arith.constant 0 : index
    %c0_4 = arith.constant 0 : index
    %5 = vector.load %arg7[%c0_2, %c0_3, %c0_4] : memref<1x128x384xbf16, #tpu.memory_space<vmem>>, vector<1x128x384xbf16>
    %6 = vector.shape_cast %5 : vector<1x128x384xbf16> to vector<128x384xbf16>
    %cst = arith.constant dense<0.000000e+00> : vector<8x384xf32>
    %7 = tpu.matmul %4, %6, %cst {dimension_numbers = #tpu.dot_dimension_numbers<[1], [0], [0], [1], [0, 0, 1, 1], [], []>} : vector<8x128xbf16>, vector<128x384xbf16>, vector<8x384xf32> -> vector<8x384xf32>
    %c0_5 = arith.constant 0 : index
    %c0_6 = arith.constant 0 : index
    %c0_7 = arith.constant 0 : index
    %8 = vector.load %arg8[%c0_5, %c0_6, %c0_7] : memref<1x1x384xf32, #tpu.memory_space<vmem>>, vector<1x1x384xf32>
    %9 = vector.shape_cast %8 : vector<1x1x384xf32> to vector<1x384xf32>
    %10 = vector.broadcast %9 : vector<1x384xf32> to vector<8x384xf32>
    %11 = arith.addf %7, %10 : vector<8x384xf32>
    %12 = vector.extract_strided_slice %11 {offsets = [0, 0], sizes = [8, 128], strides = [1, 1]} : vector<8x384xf32> to vector<8x128xf32>
    %13 = vector.extract_strided_slice %11 {offsets = [0, 128], sizes = [8, 128], strides = [1, 1]} : vector<8x384xf32> to vector<8x128xf32>
    %14 = vector.extract_strided_slice %11 {offsets = [0, 256], sizes = [8, 128], strides = [1, 1]} : vector<8x384xf32> to vector<8x128xf32>
    %c0_8 = arith.constant 0 : index
    %c0_9 = arith.constant 0 : index
    %15 = vector.load %arg4[%c0_8, %c0_9] : memref<32x128xf32, #tpu.memory_space<vmem>>, vector<32x128xf32>
    %16 = tpu.concatenate %13, %13, %13, %13 in 0 : vector<8x128xf32>, vector<8x128xf32>, vector<8x128xf32>, vector<8x128xf32> -> vector<32x128xf32>
    %17 = arith.mulf %16, %15 : vector<32x128xf32>
    %18 = arith.truncf %17 : vector<32x128xf32> to vector<32x128xbf16>
    %19 = tpu.concatenate %14, %14, %14, %14 in 0 : vector<8x128xf32>, vector<8x128xf32>, vector<8x128xf32>, vector<8x128xf32> -> vector<32x128xf32>
    %20 = arith.mulf %19, %15 : vector<32x128xf32>
    %21 = arith.truncf %20 : vector<32x128xf32> to vector<32x128xbf16>
    %22 = arith.truncf %12 : vector<8x128xf32> to vector<8x128xbf16>
    %cst_10 = arith.constant dense<0.000000e+00> : vector<8x32xf32>
    %23 = tpu.matmul %22, %18, %cst_10 {dimension_numbers = #tpu.dot_dimension_numbers<[1], [1], [0], [0], [0, 0, 1, 0], [], []>} : vector<8x128xbf16>, vector<32x128xbf16>, vector<8x32xf32> -> vector<8x32xf32>
    %cst_11 = arith.constant 0.176776692 : f32
    %24 = vector.broadcast %cst_11 : f32 to vector<8x32xf32>
    %25 = arith.mulf %23, %24 : vector<8x32xf32>
    %c0_12 = arith.constant 0 : index
    %c0_13 = arith.constant 0 : index
    %c0_14 = arith.constant 0 : index
    %26 = vector.load %arg3[%c0_12, %c0_13, %c0_14] : memref<1x8x32xf32, #tpu.memory_space<vmem>>, vector<1x8x32xf32>
    %27 = vector.shape_cast %26 : vector<1x8x32xf32> to vector<8x32xf32>
    %28 = arith.addf %25, %27 : vector<8x32xf32>
    %cst_15 = arith.constant dense<0xFF800000> : vector<8xf32>
    %29 = vector.multi_reduction <maximumf>, %28, %cst_15 [1] : vector<8x32xf32> to vector<8xf32>
    %30 = vector.shape_cast %29 : vector<8xf32> to vector<8x1xf32>
    %31 = vector.broadcast %30 : vector<8x1xf32> to vector<8x32xf32>
    %32 = arith.subf %28, %31 : vector<8x32xf32>
    %33 = math.exp %32 : vector<8x32xf32>
    %cst_16 = arith.constant dense<0.000000e+00> : vector<8x128xf32>
    %34 = tpu.matmul %33, %15, %cst_16 {dimension_numbers = #tpu.dot_dimension_numbers<[1], [0], [0], [1], [0, 0, 1, 1], [], []>} : vector<8x32xf32>, vector<32x128xf32>, vector<8x128xf32> -> vector<8x128xf32>
    %35 = arith.truncf %33 : vector<8x32xf32> to vector<8x32xbf16>
    %cst_17 = arith.constant dense<0.000000e+00> : vector<8x128xf32>
    %36 = tpu.matmul %35, %21, %cst_17 {dimension_numbers = #tpu.dot_dimension_numbers<[1], [0], [0], [1], [0, 0, 1, 1], [], []>} : vector<8x32xbf16>, vector<32x128xbf16>, vector<8x128xf32> -> vector<8x128xf32>
    %37 = tpu.reciprocal %34 {approx = true} : vector<8x128xf32> -> vector<8x128xf32>
    %38 = arith.mulf %36, %37 : vector<8x128xf32>
    %39 = arith.truncf %38 : vector<8x128xf32> to vector<8x128xbf16>
    %c0_18 = arith.constant 0 : index
    %c0_19 = arith.constant 0 : index
    %c0_20 = arith.constant 0 : index
    %40 = vector.load %arg9[%c0_18, %c0_19, %c0_20] : memref<1x128x128xbf16, #tpu.memory_space<vmem>>, vector<1x128x128xbf16>
    %41 = vector.shape_cast %40 : vector<1x128x128xbf16> to vector<128x128xbf16>
    %cst_21 = arith.constant dense<0.000000e+00> : vector<8x128xf32>
    %42 = tpu.matmul %39, %41, %cst_21 {dimension_numbers = #tpu.dot_dimension_numbers<[1], [0], [0], [1], [0, 0, 1, 1], [], []>} : vector<8x128xbf16>, vector<128x128xbf16>, vector<8x128xf32> -> vector<8x128xf32>
    %c0_22 = arith.constant 0 : index
    %c0_23 = arith.constant 0 : index
    %c0_24 = arith.constant 0 : index
    %43 = vector.load %arg10[%c0_22, %c0_23, %c0_24] : memref<1x1x128xf32, #tpu.memory_space<vmem>>, vector<1x1x128xf32>
    %44 = vector.shape_cast %43 : vector<1x1x128xf32> to vector<1x128xf32>
    %45 = vector.broadcast %44 : vector<1x128xf32> to vector<8x128xf32>
    %46 = arith.addf %42, %45 : vector<8x128xf32>
    %47 = arith.addf %46, %3 : vector<8x128xf32>
    %c0_25 = arith.constant 0 : index
    %c0_26 = arith.constant 0 : index
    %c0_27 = arith.constant 0 : index
    %48 = vector.load %arg11[%c0_25, %c0_26, %c0_27] : memref<1x1x128xf32, #tpu.memory_space<vmem>>, vector<1x1x128xf32>
    %49 = vector.shape_cast %48 : vector<1x1x128xf32> to vector<1x128xf32>
    %c0_28 = arith.constant 0 : index
    %c0_29 = arith.constant 0 : index
    %c0_30 = arith.constant 0 : index
    %50 = vector.load %arg12[%c0_28, %c0_29, %c0_30] : memref<1x1x128xf32, #tpu.memory_space<vmem>>, vector<1x1x128xf32>
    %51 = vector.shape_cast %50 : vector<1x1x128xf32> to vector<1x128xf32>
    %cst_31 = arith.constant dense<0.000000e+00> : vector<8xf32>
    %52 = vector.multi_reduction <add>, %47, %cst_31 [1] : vector<8x128xf32> to vector<8xf32>
    %53 = vector.shape_cast %52 : vector<8xf32> to vector<8x1xf32>
    %cst_32 = arith.constant 1.280000e+02 : f32
    %54 = vector.broadcast %cst_32 : f32 to vector<8x1xf32>
    %55 = arith.divf %53, %54 : vector<8x1xf32>
    %56 = vector.broadcast %55 : vector<8x1xf32> to vector<8x128xf32>
    %57 = arith.subf %47, %56 : vector<8x128xf32>
    %58 = arith.mulf %57, %57 : vector<8x128xf32>
    %cst_33 = arith.constant dense<0.000000e+00> : vector<8xf32>
    %59 = vector.multi_reduction <add>, %58, %cst_33 [1] : vector<8x128xf32> to vector<8xf32>
    %60 = vector.shape_cast %59 : vector<8xf32> to vector<8x1xf32>
    %cst_34 = arith.constant 1.280000e+02 : f32
    %61 = vector.broadcast %cst_34 : f32 to vector<8x1xf32>
    %62 = arith.divf %60, %61 : vector<8x1xf32>
    %63 = vector.broadcast %55 : vector<8x1xf32> to vector<8x128xf32>
    %64 = arith.subf %47, %63 : vector<8x128xf32>
    %cst_35 = arith.constant 9.99999996E-13 : f32
    %65 = vector.broadcast %cst_35 : f32 to vector<8x1xf32>
    %66 = arith.addf %62, %65 : vector<8x1xf32>
    %67 = math.rsqrt %66 : vector<8x1xf32>
    %68 = vector.broadcast %67 : vector<8x1xf32> to vector<8x128xf32>
    %69 = arith.mulf %64, %68 : vector<8x128xf32>
    %70 = vector.broadcast %49 : vector<1x128xf32> to vector<8x128xf32>
    %71 = arith.mulf %69, %70 : vector<8x128xf32>
    %72 = vector.broadcast %51 : vector<1x128xf32> to vector<8x128xf32>
    %73 = arith.addf %71, %72 : vector<8x128xf32>
    %74 = arith.truncf %73 : vector<8x128xf32> to vector<8x128xbf16>
    %c0_36 = arith.constant 0 : index
    %c0_37 = arith.constant 0 : index
    %c0_38 = arith.constant 0 : index
    %75 = vector.load %arg13[%c0_36, %c0_37, %c0_38] : memref<1x128x256xbf16, #tpu.memory_space<vmem>>, vector<1x128x256xbf16>
    %76 = vector.shape_cast %75 : vector<1x128x256xbf16> to vector<128x256xbf16>
    %cst_39 = arith.constant dense<0.000000e+00> : vector<8x256xf32>
    %77 = tpu.matmul %74, %76, %cst_39 {dimension_numbers = #tpu.dot_dimension_numbers<[1], [0], [0], [1], [0, 0, 1, 1], [], []>} : vector<8x128xbf16>, vector<128x256xbf16>, vector<8x256xf32> -> vector<8x256xf32>
    %c0_40 = arith.constant 0 : index
    %c0_41 = arith.constant 0 : index
    %c0_42 = arith.constant 0 : index
    %78 = vector.load %arg14[%c0_40, %c0_41, %c0_42] : memref<1x1x256xf32, #tpu.memory_space<vmem>>, vector<1x1x256xf32>
    %79 = vector.shape_cast %78 : vector<1x1x256xf32> to vector<1x256xf32>
    %80 = vector.broadcast %79 : vector<1x256xf32> to vector<8x256xf32>
    %81 = arith.addf %77, %80 : vector<8x256xf32>
    %cst_43 = arith.constant 5.000000e-01 : f32
    %82 = vector.broadcast %cst_43 : f32 to vector<8x256xf32>
    %83 = arith.mulf %82, %81 : vector<8x256xf32>
    %cst_44 = arith.constant 4.471500e-02 : f32
    %84 = vector.broadcast %cst_44 : f32 to vector<8x256xf32>
    %85 = arith.mulf %84, %81 : vector<8x256xf32>
    %86 = arith.mulf %85, %81 : vector<8x256xf32>
    %87 = arith.mulf %86, %81 : vector<8x256xf32>
    %88 = arith.addf %81, %87 : vector<8x256xf32>
    %cst_45 = arith.constant 0.797884583 : f32
    %89 = vector.broadcast %cst_45 : f32 to vector<8x256xf32>
    %90 = arith.mulf %89, %88 : vector<8x256xf32>
    %91 = math.tanh %90 : vector<8x256xf32>
    %cst_46 = arith.constant 1.000000e+00 : f32
    %92 = vector.broadcast %cst_46 : f32 to vector<8x256xf32>
    %93 = arith.addf %92, %91 : vector<8x256xf32>
    %94 = arith.mulf %83, %93 : vector<8x256xf32>
    %95 = arith.truncf %94 : vector<8x256xf32> to vector<8x256xbf16>
    %c0_47 = arith.constant 0 : index
    %c0_48 = arith.constant 0 : index
    %c0_49 = arith.constant 0 : index
    %96 = vector.load %arg15[%c0_47, %c0_48, %c0_49] : memref<1x256x128xbf16, #tpu.memory_space<vmem>>, vector<1x256x128xbf16>
    %97 = vector.shape_cast %96 : vector<1x256x128xbf16> to vector<256x128xbf16>
    %cst_50 = arith.constant dense<0.000000e+00> : vector<8x128xf32>
    %98 = tpu.matmul %95, %97, %cst_50 {dimension_numbers = #tpu.dot_dimension_numbers<[1], [0], [0], [1], [0, 0, 1, 1], [], []>} : vector<8x256xbf16>, vector<256x128xbf16>, vector<8x128xf32> -> vector<8x128xf32>
    %c0_51 = arith.constant 0 : index
    %c0_52 = arith.constant 0 : index
    %c0_53 = arith.constant 0 : index
    %99 = vector.load %arg16[%c0_51, %c0_52, %c0_53] : memref<1x1x128xf32, #tpu.memory_space<vmem>>, vector<1x1x128xf32>
    %100 = vector.shape_cast %99 : vector<1x1x128xf32> to vector<1x128xf32>
    %101 = vector.broadcast %100 : vector<1x128xf32> to vector<8x128xf32>
    %102 = arith.addf %98, %101 : vector<8x128xf32>
    %103 = arith.addf %102, %73 : vector<8x128xf32>
    %c0_54 = arith.constant 0 : index
    %c0_55 = arith.constant 0 : index
    %c0_56 = arith.constant 0 : index
    %104 = vector.load %arg17[%c0_54, %c0_55, %c0_56] : memref<1x1x128xf32, #tpu.memory_space<vmem>>, vector<1x1x128xf32>
    %105 = vector.shape_cast %104 : vector<1x1x128xf32> to vector<1x128xf32>
    %c0_57 = arith.constant 0 : index
    %c0_58 = arith.constant 0 : index
    %c0_59 = arith.constant 0 : index
    %106 = vector.load %arg18[%c0_57, %c0_58, %c0_59] : memref<1x1x128xf32, #tpu.memory_space<vmem>>, vector<1x1x128xf32>
    %107 = vector.shape_cast %106 : vector<1x1x128xf32> to vector<1x128xf32>
    %cst_60 = arith.constant dense<0.000000e+00> : vector<8xf32>
    %108 = vector.multi_reduction <add>, %103, %cst_60 [1] : vector<8x128xf32> to vector<8xf32>
    %109 = vector.shape_cast %108 : vector<8xf32> to vector<8x1xf32>
    %cst_61 = arith.constant 1.280000e+02 : f32
    %110 = vector.broadcast %cst_61 : f32 to vector<8x1xf32>
    %111 = arith.divf %109, %110 : vector<8x1xf32>
    %112 = vector.broadcast %111 : vector<8x1xf32> to vector<8x128xf32>
    %113 = arith.subf %103, %112 : vector<8x128xf32>
    %114 = arith.mulf %113, %113 : vector<8x128xf32>
    %cst_62 = arith.constant dense<0.000000e+00> : vector<8xf32>
    %115 = vector.multi_reduction <add>, %114, %cst_62 [1] : vector<8x128xf32> to vector<8xf32>
    %116 = vector.shape_cast %115 : vector<8xf32> to vector<8x1xf32>
    %cst_63 = arith.constant 1.280000e+02 : f32
    %117 = vector.broadcast %cst_63 : f32 to vector<8x1xf32>
    %118 = arith.divf %116, %117 : vector<8x1xf32>
    %119 = vector.broadcast %111 : vector<8x1xf32> to vector<8x128xf32>
    %120 = arith.subf %103, %119 : vector<8x128xf32>
    %cst_64 = arith.constant 9.99999996E-13 : f32
    %121 = vector.broadcast %cst_64 : f32 to vector<8x1xf32>
    %122 = arith.addf %118, %121 : vector<8x1xf32>
    %123 = math.rsqrt %122 : vector<8x1xf32>
    %124 = vector.broadcast %123 : vector<8x1xf32> to vector<8x128xf32>
    %125 = arith.mulf %120, %124 : vector<8x128xf32>
    %126 = vector.broadcast %105 : vector<1x128xf32> to vector<8x128xf32>
    %127 = arith.mulf %125, %126 : vector<8x128xf32>
    %128 = vector.broadcast %107 : vector<1x128xf32> to vector<8x128xf32>
    %129 = arith.addf %127, %128 : vector<8x128xf32>
    %c0_65 = arith.constant 0 : index
    %c0_66 = arith.constant 0 : index
    %130 = vector.load %arg24[%c0_65, %c0_66] : memref<8x128xf32, #tpu.memory_space<vmem>>, vector<8x128xf32>
    tpu.vector_store %arg24[%c0_65, %c0_66], %129 {strides = array<i32>} : memref<8x128xf32, #tpu.memory_space<vmem>>, vector<8x128xf32>,
    %c1_i32 = arith.constant 1 : i32
    %131 = arith.cmpi eq, %arg1, %c1_i32 : i32
    %132 = arith.extui %131 : i1 to i32
    %c0_i32_67 = arith.constant 0 : i32
    %133 = arith.cmpi ne, %132, %c0_i32_67 : i32
    scf.if %133 {
      %134 = vector.extract_strided_slice %129 {offsets = [0, 0], sizes = [1, 128], strides = [1, 1]} : vector<8x128xf32> to vector<1x128xf32>
      %135 = arith.truncf %134 : vector<1x128xf32> to vector<1x128xbf16>
      %c0_68 = arith.constant 0 : index
      %c0_69 = arith.constant 0 : index
      %136 = vector.load %arg19[%c0_68, %c0_69] : memref<128x128xbf16, #tpu.memory_space<vmem>>, vector<128x128xbf16>
      %cst_70 = arith.constant dense<0.000000e+00> : vector<1x128xf32>
      %137 = tpu.matmul %135, %136, %cst_70 {dimension_numbers = #tpu.dot_dimension_numbers<[1], [0], [0], [1], [0, 0, 1, 1], [], []>} : vector<1x128xbf16>, vector<128x128xbf16>, vector<1x128xf32> -> vector<1x128xf32>
      %c0_71 = arith.constant 0 : index
      %c0_72 = arith.constant 0 : index
      %138 = vector.load %arg20[%c0_71, %c0_72] : memref<1x128xf32, #tpu.memory_space<vmem>>, vector<1x128xf32>
      %139 = arith.addf %137, %138 : vector<1x128xf32>
      %140 = math.tanh %139 : vector<1x128xf32>
      %141 = arith.truncf %140 : vector<1x128xf32> to vector<1x128xbf16>
      %c0_73 = arith.constant 0 : index
      %c0_74 = arith.constant 0 : index
      %142 = vector.load %arg21[%c0_73, %c0_74] : memref<128x128xbf16, #tpu.memory_space<vmem>>, vector<128x128xbf16>
      %cst_75 = arith.constant dense<0.000000e+00> : vector<1x128xf32>
      %143 = tpu.matmul %141, %142, %cst_75 {dimension_numbers = #tpu.dot_dimension_numbers<[1], [0], [0], [1], [0, 0, 1, 1], [], []>} : vector<1x128xbf16>, vector<128x128xbf16>, vector<1x128xf32> -> vector<1x128xf32>
      %c0_76 = arith.constant 0 : index
      %c0_77 = arith.constant 0 : index
      %144 = vector.load %arg22[%c0_76, %c0_77] : memref<1x128xf32, #tpu.memory_space<vmem>>, vector<1x128xf32>
      %145 = arith.addf %143, %144 : vector<1x128xf32>
      %146 = vector.shape_cast %145 : vector<1x128xf32> to vector<1x128xf32>
      %147 = vector.broadcast %146 : vector<1x128xf32> to vector<8x128xf32>
      %c0_78 = arith.constant 0 : index
      %c0_79 = arith.constant 0 : index
      %148 = vector.load %arg23[%c0_78, %c0_79] : memref<8x128xf32, #tpu.memory_space<vmem>>, vector<8x128xf32>
      tpu.vector_store %arg23[%c0_78, %c0_79], %147 {strides = array<i32>} : memref<8x128xf32, #tpu.memory_space<vmem>>, vector<8x128xf32>,
    } else {
    }
    return
  }
  func.func @transform_0(%arg0: i32, %arg1: i32) -> (i32, i32) {
    %c0_i32 = arith.constant 0 : i32
    %c0_i32_0 = arith.constant 0 : i32
    return %arg0, %c0_i32 : i32, i32
  }
  func.func @transform_1(%arg0: i32, %arg1: i32) -> (i32, i32, i32) {
    %c0_i32 = arith.constant 0 : i32
    %c0_i32_0 = arith.constant 0 : i32
    %c0_i32_1 = arith.constant 0 : i32
    return %arg0, %c0_i32, %c0_i32_0 : i32, i32, i32
  }
  func.func @transform_2(%arg0: i32, %arg1: i32) -> (i32, i32) {
    %c0_i32 = arith.constant 0 : i32
    %c0_i32_0 = arith.constant 0 : i32
    %c0_i32_1 = arith.constant 0 : i32
    return %c0_i32, %c0_i32_0 : i32, i32
  }
  func.func @transform_3(%arg0: i32, %arg1: i32) -> (i32, i32) {
    %c0_i32 = arith.constant 0 : i32
    %c0_i32_0 = arith.constant 0 : i32
    %c0_i32_1 = arith.constant 0 : i32
    return %c0_i32, %c0_i32_0 : i32, i32
  }
  func.func @transform_4(%arg0: i32, %arg1: i32) -> (i32, i32) {
    %c0_i32 = arith.constant 0 : i32
    %c0_i32_0 = arith.constant 0 : i32
    %c0_i32_1 = arith.constant 0 : i32
    return %c0_i32, %c0_i32_0 : i32, i32
  }
  func.func @transform_5(%arg0: i32, %arg1: i32) -> (i32, i32, i32) {
    %c0_i32 = arith.constant 0 : i32
    %c0_i32_0 = arith.constant 0 : i32
    %c0_i32_1 = arith.constant 0 : i32
    return %arg1, %c0_i32, %c0_i32_0 : i32, i32, i32
  }
  func.func @transform_6(%arg0: i32, %arg1: i32) -> (i32, i32, i32) {
    %c0_i32 = arith.constant 0 : i32
    %c0_i32_0 = arith.constant 0 : i32
    %c0_i32_1 = arith.constant 0 : i32
    return %arg1, %c0_i32, %c0_i32_0 : i32, i32, i32
  }
  func.func @transform_7(%arg0: i32, %arg1: i32) -> (i32, i32, i32) {
    %c0_i32 = arith.constant 0 : i32
    %c0_i32_0 = arith.constant 0 : i32
    %c0_i32_1 = arith.constant 0 : i32
    return %arg1, %c0_i32, %c0_i32_0 : i32, i32, i32
  }
  func.func @transform_8(%arg0: i32, %arg1: i32) -> (i32, i32, i32) {
    %c0_i32 = arith.constant 0 : i32
    %c0_i32_0 = arith.constant 0 : i32
    %c0_i32_1 = arith.constant 0 : i32
    return %arg1, %c0_i32, %c0_i32_0 : i32, i32, i32
  }
  func.func @transform_9(%arg0: i32, %arg1: i32) -> (i32, i32, i32) {
    %c0_i32 = arith.constant 0 : i32
    %c0_i32_0 = arith.constant 0 : i32
    %c0_i32_1 = arith.constant 0 : i32
    return %arg1, %c0_i32, %c0_i32_0 : i32, i32, i32
  }
  func.func @transform_10(%arg0: i32, %arg1: i32) -> (i32, i32, i32) {
    %c0_i32 = arith.constant 0 : i32
    %c0_i32_0 = arith.constant 0 : i32
    %c0_i32_1 = arith.constant 0 : i32
    return %arg1, %c0_i32, %c0_i32_0 : i32, i32, i32
  }
  func.func @transform_11(%arg0: i32, %arg1: i32) -> (i32, i32, i32) {
    %c0_i32 = arith.constant 0 : i32
    %c0_i32_0 = arith.constant 0 : i32
    %c0_i32_1 = arith.constant 0 : i32
    return %arg1, %c0_i32, %c0_i32_0 : i32, i32, i32
  }
  func.func @transform_12(%arg0: i32, %arg1: i32) -> (i32, i32, i32) {
    %c0_i32 = arith.constant 0 : i32
    %c0_i32_0 = arith.constant 0 : i32
    %c0_i32_1 = arith.constant 0 : i32
    return %arg1, %c0_i32, %c0_i32_0 : i32, i32, i32
  }
  func.func @transform_13(%arg0: i32, %arg1: i32) -> (i32, i32, i32) {
    %c0_i32 = arith.constant 0 : i32
    %c0_i32_0 = arith.constant 0 : i32
    %c0_i32_1 = arith.constant 0 : i32
    return %arg1, %c0_i32, %c0_i32_0 : i32, i32, i32
  }
  func.func @transform_14(%arg0: i32, %arg1: i32) -> (i32, i32, i32) {
    %c0_i32 = arith.constant 0 : i32
    %c0_i32_0 = arith.constant 0 : i32
    %c0_i32_1 = arith.constant 0 : i32
    return %arg1, %c0_i32, %c0_i32_0 : i32, i32, i32
  }
  func.func @transform_15(%arg0: i32, %arg1: i32) -> (i32, i32, i32) {
    %c0_i32 = arith.constant 0 : i32
    %c0_i32_0 = arith.constant 0 : i32
    %c0_i32_1 = arith.constant 0 : i32
    return %arg1, %c0_i32, %c0_i32_0 : i32, i32, i32
  }
  func.func @transform_16(%arg0: i32, %arg1: i32) -> (i32, i32, i32) {
    %c0_i32 = arith.constant 0 : i32
    %c0_i32_0 = arith.constant 0 : i32
    %c0_i32_1 = arith.constant 0 : i32
    return %arg1, %c0_i32, %c0_i32_0 : i32, i32, i32
  }
  func.func @transform_17(%arg0: i32, %arg1: i32) -> (i32, i32) {
    %c0_i32 = arith.constant 0 : i32
    %c0_i32_0 = arith.constant 0 : i32
    %c0_i32_1 = arith.constant 0 : i32
    return %c0_i32, %c0_i32_0 : i32, i32
  }
  func.func @transform_18(%arg0: i32, %arg1: i32) -> (i32, i32) {
    %c0_i32 = arith.constant 0 : i32
    %c0_i32_0 = arith.constant 0 : i32
    %c0_i32_1 = arith.constant 0 : i32
    return %c0_i32, %c0_i32_0 : i32, i32
  }
  func.func @transform_19(%arg0: i32, %arg1: i32) -> (i32, i32) {
    %c0_i32 = arith.constant 0 : i32
    %c0_i32_0 = arith.constant 0 : i32
    %c0_i32_1 = arith.constant 0 : i32
    return %c0_i32, %c0_i32_0 : i32, i32
  }
  func.func @transform_20(%arg0: i32, %arg1: i32) -> (i32, i32) {
    %c0_i32 = arith.constant 0 : i32
    %c0_i32_0 = arith.constant 0 : i32
    %c0_i32_1 = arith.constant 0 : i32
    return %c0_i32, %c0_i32_0 : i32, i32
  }
  func.func @transform_21(%arg0: i32, %arg1: i32) -> (i32, i32) {
    %c0_i32 = arith.constant 0 : i32
    %c0_i32_0 = arith.constant 0 : i32
    return %arg0, %c0_i32 : i32, i32
  }
}

</mosaic_0001>

<llo_original>
// kernel: san_bert_forward.1
$region0: #{san_bert_forward.1}
  #allocation0 [shape = 'u32[]', space=smem, size = 0x4, offset = 0x4, fixed_abs, tag = 'smem constant byte address 0x4 - core index']
  #allocation1 [shape = 'u32[144,128]{1,0:T(1,128)}', space=vmem, size = 0x12000, scoped, tag = 'internal scratch']
  #allocation2 [shape = 'f32[8,128]{1,0:T(8,128)}', space=vmem, size = 0x1000, scoped, tag = 'scratch operand']
  %s0 = inlined_call_operand.vmem [shape: f32[16,128], index: 0, kind: input, shape index: {}]
  %s1 = inlined_call_operand.vmem [shape: f32[2,8,32], index: 1, kind: input, shape index: {}]
  %s2 = inlined_call_operand.vmem [shape: f32[32,128], index: 2, kind: input, shape index: {}]
  %s3 = inlined_call_operand.hbm [shape: f32[1,128], index: 3, kind: input, shape index: {}]
  %s4 = inlined_call_operand.hbm [shape: f32[1,128], index: 4, kind: input, shape index: {}]
  %s5 = inlined_call_operand.vmem [shape: bf16[2,128,384], index: 5, kind: input, shape index: {}]
  %s6 = inlined_call_operand.hbm [shape: f32[2,1,384], index: 6, kind: input, shape index: {}]
  %s7 = inlined_call_operand.vmem [shape: bf16[2,128,128], index: 7, kind: input, shape index: {}]
  %s8 = inlined_call_operand.vmem [shape: f32[2,1,128], index: 8, kind: input, shape index: {}]
  %s9 = inlined_call_operand.hbm [shape: f32[2,1,128], index: 9, kind: input, shape index: {}]
  %s10 = inlined_call_operand.hbm [shape: f32[2,1,128], index: 10, kind: input, shape index: {}]
  %s11 = inlined_call_operand.hbm [shape: bf16[2,128,256], index: 11, kind: input, shape index: {}]
  %s12 = inlined_call_operand.hbm [shape: f32[2,1,256], index: 12, kind: input, shape index: {}]
  %s13 = inlined_call_operand.hbm [shape: bf16[2,256,128], index: 13, kind: input, shape index: {}]
  %s14 = inlined_call_operand.hbm [shape: f32[2,1,128], index: 14, kind: input, shape index: {}]
  %s15 = inlined_call_operand.hbm [shape: f32[2,1,128], index: 15, kind: input, shape index: {}]
  %s16 = inlined_call_operand.hbm [shape: f32[2,1,128], index: 16, kind: input, shape index: {}]
  %s17 = inlined_call_operand.vmem [shape: bf16[128,128], index: 17, kind: input, shape index: {}]
  %s18 = inlined_call_operand.vmem [shape: f32[1,128], index: 18, kind: input, shape index: {}]
  %s19 = inlined_call_operand.hbm [shape: bf16[128,128], index: 19, kind: input, shape index: {}]
  %s20 = inlined_call_operand.vmem [shape: f32[1,128], index: 20, kind: input, shape index: {}]
  %s21 = inlined_call_operand.vmem [shape: f32[16,128], index: 21, kind: output, shape index: {}]
  %s22 = sld [smem:[#allocation0]]
  $region173: #{san_bert_forward.1} parent=0
    _
  %s24 = ssub.s32 1, %s22
  %s25 = scalar_select 0, %s24, %s22
  $region1: #{san_bert_forward.1} parent=0
    #allocation3 [shape = 'u8[512]{0}', space=vmem, size = 0x400, scoped, tag = 'input window, operand 3, single buffered']
    #allocation4 [shape = 's32[2]{0}', space=sflag, size = 0x8, scoped, tag = 'scoped memory for san_bert_forward.1']
    #allocation5 [shape = 'u8[512]{0}', space=vmem, size = 0x400, scoped, tag = 'input window, operand 4, single buffered']
    #allocation6 [shape = 's32[1]{0}', space=sflag, size = 0x4, scoped, tag = 'scoped memory for san_bert_forward.1']
    #allocation7 [shape = 'u8[3072]{0}', space=vmem, size = 0xc00, scoped, tag = 'input window, operand 6']
    #allocation8 [shape = 'u8[1024]{0}', space=vmem, size = 0x400, scoped, tag = 'input window, operand 9']
    #allocation9 [shape = 'u8[1024]{0}', space=vmem, size = 0x400, scoped, tag = 'input window, operand 10']
    #allocation10 [shape = 'u8[131072]{0}', space=vmem, size = 0x20000, scoped, tag = 'input window, operand 11']
    #allocation11 [shape = 'u8[2048]{0}', space=vmem, size = 0x800, scoped, tag = 'input window, operand 12']
    #allocation12 [shape = 'u8[131072]{0}', space=vmem, size = 0x20000, scoped, tag = 'input window, operand 13']
    #allocation13 [shape = 'u8[1024]{0}', space=vmem, size = 0x400, scoped, tag = 'input window, operand 14']
    #allocation14 [shape = 'u8[1024]{0}', space=vmem, size = 0x400, scoped, tag = 'input window, operand 15']
    #allocation15 [shape = 'u8[1024]{0}', space=vmem, size = 0x400, scoped, tag = 'input window, operand 16']
    #allocation16 [shape = 'u8[32768]{0}', space=vmem, size = 0x8000, scoped, tag = 'input window, operand 19, single buffered']
    %26 = vsyncpa [#allocation4], 0
    %27 = vsyncpa [#allocation6], 0
    loop: start=0, step=1, limit=6
    $region2: #{san_bert_forward.1} parent=1 // loop_pre_header
      _
    $region3: #{san_bert_forward.1} parent=1 // loop_header
      %s29 = sphi 0, %s33
      %p30 = scmp.ge.s32.totalorder %s29, 6
      %s36 = sphi 0, %s48
      %s37 = sphi 0, %s44
      %s38 = sphi 0, %s36
      %s39 = sphi 0, %s37
      %s40 = sphi 0, %s38
      %s41 = sphi 0, %s39
      %s51 = sphi 0, %s53
      %s54 = sphi 0, %s51
      %s55 = sphi 0, %s54
      %s71 = sphi 0, %s55
      %s77 = sphi 0, %s79
      %s80 = sphi 0, %s77
      %s81 = sphi 0, %s80
      %s97 = sphi 0, %s81
      %s101 = sphi 0, %s101
      %s103 = sphi 0, %s101
      %s104 = sphi 0, %s103
      %s118 = sphi 0, %s104
      %s122 = sphi 0, %s122
      %s124 = sphi 0, %s122
      %s125 = sphi 0, %s124
      %s139 = sphi 0, %s125
      %s143 = sphi 0, %s143
      %s145 = sphi 0, %s143
      %s146 = sphi 0, %s145
      %s160 = sphi 0, %s146
      %s166 = sphi 0, %s168
      %s169 = sphi 0, %s166
      %s170 = sphi 0, %s169
      %s186 = sphi 0, %s170
      %s192 = sphi 0, %s194
      %s195 = sphi 0, %s192
      %s196 = sphi 0, %s195
      %s212 = sphi 0, %s196
      %s218 = sphi 0, %s220
      %s221 = sphi 0, %s218
      %s222 = sphi 0, %s221
      %s238 = sphi 0, %s222
      %s244 = sphi 0, %s246
      %s247 = sphi 0, %s244
      %s248 = sphi 0, %s247
      %s264 = sphi 0, %s248
      %s270 = sphi 0, %s272
      %s273 = sphi 0, %s270
      %s274 = sphi 0, %s273
      %s290 = sphi 0, %s274
      %s296 = sphi 0, %s298
      %s299 = sphi 0, %s296
      %s300 = sphi 0, %s299
      %s316 = sphi 0, %s300
      %s322 = sphi 0, %s324
      %s325 = sphi 0, %s322
      %s326 = sphi 0, %s325
      %s342 = sphi 0, %s326
      %s348 = sphi 0, %s350
      %s351 = sphi 0, %s348
      %s352 = sphi 0, %s351
      %s368 = sphi 0, %s352
      %s374 = sphi 0, %s376
      %s377 = sphi 0, %s374
      %s378 = sphi 0, %s377
      %s394 = sphi 0, %s378
      %s400 = sphi 0, %s402
      %s403 = sphi 0, %s400
      %s404 = sphi 0, %s403
      %s420 = sphi 0, %s404
      %s426 = sphi 0, %s428
      %s429 = sphi 0, %s426
      %s430 = sphi 0, %s429
      %s446 = sphi 0, %s430
      %s452 = sphi 0, %s454
      %s455 = sphi 0, %s452
      %s456 = sphi 0, %s455
      %s472 = sphi 0, %s456
      %s476 = sphi 0, %s476
      %s478 = sphi 0, %s476
      %s479 = sphi 0, %s478
      %s493 = sphi 0, %s479
      %s497 = sphi 0, %s497
      %s499 = sphi 0, %s497
      %s500 = sphi 0, %s499
      %s514 = sphi 0, %s500
      %s518 = sphi 0, %s518
      %s520 = sphi 0, %s518
      %s521 = sphi 0, %s520
      %s535 = sphi 0, %s521
      %s539 = sphi 0, %s539
      %s541 = sphi 0, %s539
      %s542 = sphi 0, %s541
      %s556 = sphi 0, %s542
      %s562 = sphi 0, %s564
      %s565 = sphi 0, %s562
      %s566 = sphi 0, %s565
      %s582 = sphi 0, %s566
    $region4: #{san_bert_forward.1} parent=1 // loop_header_branch
      %32 = sbr.rel (%p30) target = $region8
    $region5: #{san_bert_forward.1} parent=1 // loop_body
      %s34 = ssub.s32 %s29, 1
      %s35 = ssub.s32 %s29, 2
      %s42 = sadd.s32 1, %s37
      %p43 = scmp.ge.s32.totalorder %s42, 2
      %s44 = scalar_select %p43, 0, %s42
      %s45 = sadd.s32 1, %s36
      %s46 = scalar_select %p43, %s45, %s36
      %p47 = scmp.ge.s32.totalorder %s46, 2
      %s48 = scalar_select %p47, 0, %s46
      %s49 = ssub.s32 %s36, %s48
      %p50 = scmp.eq.s32.totalorder %s49, 0
      %s52 = sadd.s32 %s51, 1
      %s53 = scalar_select %p50, %s51, %s52
      %p56 = pneg %p50
      %p57 = scmp.eq.s32.totalorder %s29, 3
      %p58 = por %p56, %p57
      %p59 = scmp.ne.s32.totalorder %s51, %s54
      %p60 = scmp.eq.s32.totalorder %s29, 0
      %p61 = por %p59, %p60
      %p62 = scmp.ne.s32.totalorder %s51, %s54
      %p63 = scmp.eq.s32.totalorder %s34, 3
      %p64 = por %p62, %p63
      %p65 = scmp.ne.s32.totalorder %s54, %s55
      %p66 = scmp.eq.s32.totalorder %s34, 0
      %p67 = por %p65, %p66
      %p68 = scmp.ne.s32.totalorder %s54, %s55
      %p69 = scmp.eq.s32.totalorder %s35, 3
      %p70 = por %p68, %p69
      %p72 = scmp.ne.s32.totalorder %s55, %s71
      %p73 = scmp.eq.s32.totalorder %s35, 0
      %p74 = por %p72, %p73
      %s75 = ssub.s32 %s36, %s48
      %p76 = scmp.eq.s32.totalorder %s75, 0
      %s78 = sadd.s32 %s77, 1
      %s79 = scalar_select %p76, %s77, %s78
      %p82 = pneg %p76
      %p83 = scmp.eq.s32.totalorder %s29, 3
      %p84 = por %p82, %p83
      %p85 = scmp.ne.s32.totalorder %s77, %s80
      %p86 = scmp.eq.s32.totalorder %s29, 0
      %p87 = por %p85, %p86
      %p88 = scmp.ne.s32.totalorder %s77, %s80
      %p89 = scmp.eq.s32.totalorder %s34, 3
      %p90 = por %p88, %p89
      %p91 = scmp.ne.s32.totalorder %s80, %s81
      %p92 = scmp.eq.s32.totalorder %s34, 0
      %p93 = por %p91, %p92
      %p94 = scmp.ne.s32.totalorder %s80, %s81
      %p95 = scmp.eq.s32.totalorder %s35, 3
      %p96 = por %p94, %p95
      %p98 = scmp.ne.s32.totalorder %s81, %s97
      %p99 = scmp.eq.s32.totalorder %s35, 0
      %p100 = por %p98, %p99
      %s102 = sadd.s32 %s101, 1
      %p105 = scmp.eq.s32.totalorder %s29, 3
      %p106 = scmp.ne.s32.totalorder %s101, %s103
      %p107 = scmp.eq.s32.totalorder %s29, 0
      %p108 = por %p106, %p107
      %p109 = scmp.ne.s32.totalorder %s101, %s103
      %p110 = scmp.eq.s32.totalorder %s34, 3
      %p111 = por %p109, %p110
      %p112 = scmp.ne.s32.totalorder %s103, %s104
      %p113 = scmp.eq.s32.totalorder %s34, 0
      %p114 = por %p112, %p113
      %p115 = scmp.ne.s32.totalorder %s103, %s104
      %p116 = scmp.eq.s32.totalorder %s35, 3
      %p117 = por %p115, %p116
      %p119 = scmp.ne.s32.totalorder %s104, %s118
      %p120 = scmp.eq.s32.totalorder %s35, 0
      %p121 = por %p119, %p120
      %s123 = sadd.s32 %s122, 1
      %p126 = scmp.eq.s32.totalorder %s29, 3
      %p127 = scmp.ne.s32.totalorder %s122, %s124
      %p128 = scmp.eq.s32.totalorder %s29, 0
      %p129 = por %p127, %p128
      %p130 = scmp.ne.s32.totalorder %s122, %s124
      %p131 = scmp.eq.s32.totalorder %s34, 3
      %p132 = por %p130, %p131
      %p133 = scmp.ne.s32.totalorder %s124, %s125
      %p134 = scmp.eq.s32.totalorder %s34, 0
      %p135 = por %p133, %p134
      %p136 = scmp.ne.s32.totalorder %s124, %s125
      %p137 = scmp.eq.s32.totalorder %s35, 3
      %p138 = por %p136, %p137
      %p140 = scmp.ne.s32.totalorder %s125, %s139
      %p141 = scmp.eq.s32.totalorder %s35, 0
      %p142 = por %p140, %p141
      %s144 = sadd.s32 %s143, 1
      %p147 = scmp.eq.s32.totalorder %s29, 3
      %p148 = scmp.ne.s32.totalorder %s143, %s145
      %p149 = scmp.eq.s32.totalorder %s29, 0
      %p150 = por %p148, %p149
      %p151 = scmp.ne.s32.totalorder %s143, %s145
      %p152 = scmp.eq.s32.totalorder %s34, 3
      %p153 = por %p151, %p152
      %p154 = scmp.ne.s32.totalorder %s145, %s146
      %p155 = scmp.eq.s32.totalorder %s34, 0
      %p156 = por %p154, %p155
      %p157 = scmp.ne.s32.totalorder %s145, %s146
      %p158 = scmp.eq.s32.totalorder %s35, 3
      %p159 = por %p157, %p158
      %p161 = scmp.ne.s32.totalorder %s146, %s160
      %p162 = scmp.eq.s32.totalorder %s35, 0
      %p163 = por %p161, %p162
      %s164 = ssub.s32 %s37, %s44
      %p165 = scmp.eq.s32.totalorder %s164, 0
      %s167 = sadd.s32 %s166, 1
      %s168 = scalar_select %p165, %s166, %s167
      %p171 = pneg %p165
      %p172 = scmp.eq.s32.totalorder %s29, 3
      %p173 = por %p171, %p172
      %p174 = scmp.ne.s32.totalorder %s166, %s169
      %p175 = scmp.eq.s32.totalorder %s29, 0
      %p176 = por %p174, %p175
      %p177 = scmp.ne.s32.totalorder %s166, %s169
      %p178 = scmp.eq.s32.totalorder %s34, 3
      %p179 = por %p177, %p178
      %p180 = scmp.ne.s32.totalorder %s169, %s170
      %p181 = scmp.eq.s32.totalorder %s34, 0
      %p182 = por %p180, %p181
      %p183 = scmp.ne.s32.totalorder %s169, %s170
      %p184 = scmp.eq.s32.totalorder %s35, 3
      %p185 = por %p183, %p184
      %p187 = scmp.ne.s32.totalorder %s170, %s186
      %p188 = scmp.eq.s32.totalorder %s35, 0
      %p189 = por %p187, %p188
      %s190 = ssub.s32 %s37, %s44
      %p191 = scmp.eq.s32.totalorder %s190, 0
      %s193 = sadd.s32 %s192, 1
      %s194 = scalar_select %p191, %s192, %s193
      %p197 = pneg %p191
      %p198 = scmp.eq.s32.totalorder %s29, 3
      %p199 = por %p197, %p198
      %p200 = scmp.ne.s32.totalorder %s192, %s195
      %p201 = scmp.eq.s32.totalorder %s29, 0
      %p202 = por %p200, %p201
      %p203 = scmp.ne.s32.totalorder %s192, %s195
      %p204 = scmp.eq.s32.totalorder %s34, 3
      %p205 = por %p203, %p204
      %p206 = scmp.ne.s32.totalorder %s195, %s196
      %p207 = scmp.eq.s32.totalorder %s34, 0
      %p208 = por %p206, %p207
      %p209 = scmp.ne.s32.totalorder %s195, %s196
      %p210 = scmp.eq.s32.totalorder %s35, 3
      %p211 = por %p209, %p210
      %p213 = scmp.ne.s32.totalorder %s196, %s212
      %p214 = scmp.eq.s32.totalorder %s35, 0
      %p215 = por %p213, %p214
      %s216 = ssub.s32 %s37, %s44
      %p217 = scmp.eq.s32.totalorder %s216, 0
      %s219 = sadd.s32 %s218, 1
      %s220 = scalar_select %p217, %s218, %s219
      %p223 = pneg %p217
      %p224 = scmp.eq.s32.totalorder %s29, 3
      %p225 = por %p223, %p224
      %p226 = scmp.ne.s32.totalorder %s218, %s221
      %p227 = scmp.eq.s32.totalorder %s29, 0
      %p228 = por %p226, %p227
      %p229 = scmp.ne.s32.totalorder %s218, %s221
      %p230 = scmp.eq.s32.totalorder %s34, 3
      %p231 = por %p229, %p230
      %p232 = scmp.ne.s32.totalorder %s221, %s222
      %p233 = scmp.eq.s32.totalorder %s34, 0
      %p234 = por %p232, %p233
      %p235 = scmp.ne.s32.totalorder %s221, %s222
      %p236 = scmp.eq.s32.totalorder %s35, 3
      %p237 = por %p235, %p236
      %p239 = scmp.ne.s32.totalorder %s222, %s238
      %p240 = scmp.eq.s32.totalorder %s35, 0
      %p241 = por %p239, %p240
      %s242 = ssub.s32 %s37, %s44
      %p243 = scmp.eq.s32.totalorder %s242, 0
      %s245 = sadd.s32 %s244, 1
      %s246 = scalar_select %p243, %s244, %s245
      %p249 = pneg %p243
      %p250 = scmp.eq.s32.totalorder %s29, 3
      %p251 = por %p249, %p250
      %p252 = scmp.ne.s32.totalorder %s244, %s247
      %p253 = scmp.eq.s32.totalorder %s29, 0
      %p254 = por %p252, %p253
      %p255 = scmp.ne.s32.totalorder %s244, %s247
      %p256 = scmp.eq.s32.totalorder %s34, 3
      %p257 = por %p255, %p256
      %p258 = scmp.ne.s32.totalorder %s247, %s248
      %p259 = scmp.eq.s32.totalorder %s34, 0
      %p260 = por %p258, %p259
      %p261 = scmp.ne.s32.totalorder %s247, %s248
      %p262 = scmp.eq.s32.totalorder %s35, 3
      %p263 = por %p261, %p262
      %p265 = scmp.ne.s32.totalorder %s248, %s264
      %p266 = scmp.eq.s32.totalorder %s35, 0
      %p267 = por %p265, %p266
      %s268 = ssub.s32 %s37, %s44
      %p269 = scmp.eq.s32.totalorder %s268, 0
      %s271 = sadd.s32 %s270, 1
      %s272 = scalar_select %p269, %s270, %s271
      %p275 = pneg %p269
      %p276 = scmp.eq.s32.totalorder %s29, 3
      %p277 = por %p275, %p276
      %p278 = scmp.ne.s32.totalorder %s270, %s273
      %p279 = scmp.eq.s32.totalorder %s29, 0
      %p280 = por %p278, %p279
      %p281 = scmp.ne.s32.totalorder %s270, %s273
      %p282 = scmp.eq.s32.totalorder %s34, 3
      %p283 = por %p281, %p282
      %p284 = scmp.ne.s32.totalorder %s273, %s274
      %p285 = scmp.eq.s32.totalorder %s34, 0
      %p286 = por %p284, %p285
      %p287 = scmp.ne.s32.totalorder %s273, %s274
      %p288 = scmp.eq.s32.totalorder %s35, 3
      %p289 = por %p287, %p288
      %p291 = scmp.ne.s32.totalorder %s274, %s290
      %p292 = scmp.eq.s32.totalorder %s35, 0
      %p293 = por %p291, %p292
      %s294 = ssub.s32 %s37, %s44
      %p295 = scmp.eq.s32.totalorder %s294, 0
      %s297 = sadd.s32 %s296, 1
      %s298 = scalar_select %p295, %s296, %s297
      %p301 = pneg %p295
      %p302 = scmp.eq.s32.totalorder %s29, 3
      %p303 = por %p301, %p302
      %p304 = scmp.ne.s32.totalorder %s296, %s299
      %p305 = scmp.eq.s32.totalorder %s29, 0
      %p306 = por %p304, %p305
      %p307 = scmp.ne.s32.totalorder %s296, %s299
      %p308 = scmp.eq.s32.totalorder %s34, 3
      %p309 = por %p307, %p308
      %p310 = scmp.ne.s32.totalorder %s299, %s300
      %p311 = scmp.eq.s32.totalorder %s34, 0
      %p312 = por %p310, %p311
      %p313 = scmp.ne.s32.totalorder %s299, %s300
      %p314 = scmp.eq.s32.totalorder %s35, 3
      %p315 = por %p313, %p314
      %p317 = scmp.ne.s32.totalorder %s300, %s316
      %p318 = scmp.eq.s32.totalorder %s35, 0
      %p319 = por %p317, %p318
      %s320 = ssub.s32 %s37, %s44
      %p321 = scmp.eq.s32.totalorder %s320, 0
      %s323 = sadd.s32 %s322, 1
      %s324 = scalar_select %p321, %s322, %s323
      %p327 = pneg %p321
      %p328 = scmp.eq.s32.totalorder %s29, 3
      %p329 = por %p327, %p328
      %p330 = scmp.ne.s32.totalorder %s322, %s325
      %p331 = scmp.eq.s32.totalorder %s29, 0
      %p332 = por %p330, %p331
      %p333 = scmp.ne.s32.totalorder %s322, %s325
      %p334 = scmp.eq.s32.totalorder %s34, 3
      %p335 = por %p333, %p334
      %p336 = scmp.ne.s32.totalorder %s325, %s326
      %p337 = scmp.eq.s32.totalorder %s34, 0
      %p338 = por %p336, %p337
      %p339 = scmp.ne.s32.totalorder %s325, %s326
      %p340 = scmp.eq.s32.totalorder %s35, 3
      %p341 = por %p339, %p340
      %p343 = scmp.ne.s32.totalorder %s326, %s342
      %p344 = scmp.eq.s32.totalorder %s35, 0
      %p345 = por %p343, %p344
      %s346 = ssub.s32 %s37, %s44
      %p347 = scmp.eq.s32.totalorder %s346, 0
      %s349 = sadd.s32 %s348, 1
      %s350 = scalar_select %p347, %s348, %s349
      %p353 = pneg %p347
      %p354 = scmp.eq.s32.totalorder %s29, 3
      %p355 = por %p353, %p354
      %p356 = scmp.ne.s32.totalorder %s348, %s351
      %p357 = scmp.eq.s32.totalorder %s29, 0
      %p358 = por %p356, %p357
      %p359 = scmp.ne.s32.totalorder %s348, %s351
      %p360 = scmp.eq.s32.totalorder %s34, 3
      %p361 = por %p359, %p360
      %p362 = scmp.ne.s32.totalorder %s351, %s352
      %p363 = scmp.eq.s32.totalorder %s34, 0
      %p364 = por %p362, %p363
      %p365 = scmp.ne.s32.totalorder %s351, %s352
      %p366 = scmp.eq.s32.totalorder %s35, 3
      %p367 = por %p365, %p366
      %p369 = scmp.ne.s32.totalorder %s352, %s368
      %p370 = scmp.eq.s32.totalorder %s35, 0
      %p371 = por %p369, %p370
      %s372 = ssub.s32 %s37, %s44
      %p373 = scmp.eq.s32.totalorder %s372, 0
      %s375 = sadd.s32 %s374, 1
      %s376 = scalar_select %p373, %s374, %s375
      %p379 = pneg %p373
      %p380 = scmp.eq.s32.totalorder %s29, 3
      %p381 = por %p379, %p380
      %p382 = scmp.ne.s32.totalorder %s374, %s377
      %p383 = scmp.eq.s32.totalorder %s29, 0
      %p384 = por %p382, %p383
      %p385 = scmp.ne.s32.totalorder %s374, %s377
      %p386 = scmp.eq.s32.totalorder %s34, 3
      %p387 = por %p385, %p386
      %p388 = scmp.ne.s32.totalorder %s377, %s378
      %p389 = scmp.eq.s32.totalorder %s34, 0
      %p390 = por %p388, %p389
      %p391 = scmp.ne.s32.totalorder %s377, %s378
      %p392 = scmp.eq.s32.totalorder %s35, 3
      %p393 = por %p391, %p392
      %p395 = scmp.ne.s32.totalorder %s378, %s394
      %p396 = scmp.eq.s32.totalorder %s35, 0
      %p397 = por %p395, %p396
      %s398 = ssub.s32 %s37, %s44
      %p399 = scmp.eq.s32.totalorder %s398, 0
      %s401 = sadd.s32 %s400, 1
      %s402 = scalar_select %p399, %s400, %s401
      %p405 = pneg %p399
      %p406 = scmp.eq.s32.totalorder %s29, 3
      %p407 = por %p405, %p406
      %p408 = scmp.ne.s32.totalorder %s400, %s403
      %p409 = scmp.eq.s32.totalorder %s29, 0
      %p410 = por %p408, %p409
      %p411 = scmp.ne.s32.totalorder %s400, %s403
      %p412 = scmp.eq.s32.totalorder %s34, 3
      %p413 = por %p411, %p412
      %p414 = scmp.ne.s32.totalorder %s403, %s404
      %p415 = scmp.eq.s32.totalorder %s34, 0
      %p416 = por %p414, %p415
      %p417 = scmp.ne.s32.totalorder %s403, %s404
      %p418 = scmp.eq.s32.totalorder %s35, 3
      %p419 = por %p417, %p418
      %p421 = scmp.ne.s32.totalorder %s404, %s420
      %p422 = scmp.eq.s32.totalorder %s35, 0
      %p423 = por %p421, %p422
      %s424 = ssub.s32 %s37, %s44
      %p425 = scmp.eq.s32.totalorder %s424, 0
      %s427 = sadd.s32 %s426, 1
      %s428 = scalar_select %p425, %s426, %s427
      %p431 = pneg %p425
      %p432 = scmp.eq.s32.totalorder %s29, 3
      %p433 = por %p431, %p432
      %p434 = scmp.ne.s32.totalorder %s426, %s429
      %p435 = scmp.eq.s32.totalorder %s29, 0
      %p436 = por %p434, %p435
      %p437 = scmp.ne.s32.totalorder %s426, %s429
      %p438 = scmp.eq.s32.totalorder %s34, 3
      %p439 = por %p437, %p438
      %p440 = scmp.ne.s32.totalorder %s429, %s430
      %p441 = scmp.eq.s32.totalorder %s34, 0
      %p442 = por %p440, %p441
      %p443 = scmp.ne.s32.totalorder %s429, %s430
      %p444 = scmp.eq.s32.totalorder %s35, 3
      %p445 = por %p443, %p444
      %p447 = scmp.ne.s32.totalorder %s430, %s446
      %p448 = scmp.eq.s32.totalorder %s35, 0
      %p449 = por %p447, %p448
      %s450 = ssub.s32 %s37, %s44
      %p451 = scmp.eq.s32.totalorder %s450, 0
      %s453 = sadd.s32 %s452, 1
      %s454 = scalar_select %p451, %s452, %s453
      %p457 = pneg %p451
      %p458 = scmp.eq.s32.totalorder %s29, 3
      %p459 = por %p457, %p458
      %p460 = scmp.ne.s32.totalorder %s452, %s455
      %p461 = scmp.eq.s32.totalorder %s29, 0
      %p462 = por %p460, %p461
      %p463 = scmp.ne.s32.totalorder %s452, %s455
      %p464 = scmp.eq.s32.totalorder %s34, 3
      %p465 = por %p463, %p464
      %p466 = scmp.ne.s32.totalorder %s455, %s456
      %p467 = scmp.eq.s32.totalorder %s34, 0
      %p468 = por %p466, %p467
      %p469 = scmp.ne.s32.totalorder %s455, %s456
      %p470 = scmp.eq.s32.totalorder %s35, 3
      %p471 = por %p469, %p470
      %p473 = scmp.ne.s32.totalorder %s456, %s472
      %p474 = scmp.eq.s32.totalorder %s35, 0
      %p475 = por %p473, %p474
      %s477 = sadd.s32 %s476, 1
      %p480 = scmp.eq.s32.totalorder %s29, 3
      %p481 = scmp.ne.s32.totalorder %s476, %s478
      %p482 = scmp.eq.s32.totalorder %s29, 0
      %p483 = por %p481, %p482
      %p484 = scmp.ne.s32.totalorder %s476, %s478
      %p485 = scmp.eq.s32.totalorder %s34, 3
      %p486 = por %p484, %p485
      %p487 = scmp.ne.s32.totalorder %s478, %s479
      %p488 = scmp.eq.s32.totalorder %s34, 0
      %p489 = por %p487, %p488
      %p490 = scmp.ne.s32.totalorder %s478, %s479
      %p491 = scmp.eq.s32.totalorder %s35, 3
      %p492 = por %p490, %p491
      %p494 = scmp.ne.s32.totalorder %s479, %s493
      %p495 = scmp.eq.s32.totalorder %s35, 0
      %p496 = por %p494, %p495
      %s498 = sadd.s32 %s497, 1
      %p501 = scmp.eq.s32.totalorder %s29, 3
      %p502 = scmp.ne.s32.totalorder %s497, %s499
      %p503 = scmp.eq.s32.totalorder %s29, 0
      %p504 = por %p502, %p503
      %p505 = scmp.ne.s32.totalorder %s497, %s499
      %p506 = scmp.eq.s32.totalorder %s34, 3
      %p507 = por %p505, %p506
      %p508 = scmp.ne.s32.totalorder %s499, %s500
      %p509 = scmp.eq.s32.totalorder %s34, 0
      %p510 = por %p508, %p509
      %p511 = scmp.ne.s32.totalorder %s499, %s500
      %p512 = scmp.eq.s32.totalorder %s35, 3
      %p513 = por %p511, %p512
      %p515 = scmp.ne.s32.totalorder %s500, %s514
      %p516 = scmp.eq.s32.totalorder %s35, 0
      %p517 = por %p515, %p516
      %s519 = sadd.s32 %s518, 1
      %p522 = scmp.eq.s32.totalorder %s29, 3
      %p523 = scmp.ne.s32.totalorder %s518, %s520
      %p524 = scmp.eq.s32.totalorder %s29, 0
      %p525 = por %p523, %p524
      %p526 = scmp.ne.s32.totalorder %s518, %s520
      %p527 = scmp.eq.s32.totalorder %s34, 3
      %p528 = por %p526, %p527
      %p529 = scmp.ne.s32.totalorder %s520, %s521
      %p530 = scmp.eq.s32.totalorder %s34, 0
      %p531 = por %p529, %p530
      %p532 = scmp.ne.s32.totalorder %s520, %s521
      %p533 = scmp.eq.s32.totalorder %s35, 3
      %p534 = por %p532, %p533
      %p536 = scmp.ne.s32.totalorder %s521, %s535
      %p537 = scmp.eq.s32.totalorder %s35, 0
      %p538 = por %p536, %p537
      %s540 = sadd.s32 %s539, 1
      %p543 = scmp.eq.s32.totalorder %s29, 3
      %p544 = scmp.ne.s32.totalorder %s539, %s541
      %p545 = scmp.eq.s32.totalorder %s29, 0
      %p546 = por %p544, %p545
      %p547 = scmp.ne.s32.totalorder %s539, %s541
      %p548 = scmp.eq.s32.totalorder %s34, 3
      %p549 = por %p547, %p548
      %p550 = scmp.ne.s32.totalorder %s541, %s542
      %p551 = scmp.eq.s32.totalorder %s34, 0
      %p552 = por %p550, %p551
      %p553 = scmp.ne.s32.totalorder %s541, %s542
      %p554 = scmp.eq.s32.totalorder %s35, 3
      %p555 = por %p553, %p554
      %p557 = scmp.ne.s32.totalorder %s542, %s556
      %p558 = scmp.eq.s32.totalorder %s35, 0
      %p559 = por %p557, %p558
      %s560 = ssub.s32 %s36, %s48
      %p561 = scmp.eq.s32.totalorder %s560, 0
      %s563 = sadd.s32 %s562, 1
      %s564 = scalar_select %p561, %s562, %s563
      %p567 = pneg %p561
      %p568 = scmp.eq.s32.totalorder %s29, 3
      %p569 = por %p567, %p568
      %p570 = scmp.ne.s32.totalorder %s562, %s565
      %p571 = scmp.eq.s32.totalorder %s29, 0
      %p572 = por %p570, %p571
      %p573 = scmp.ne.s32.totalorder %s562, %s565
      %p574 = scmp.eq.s32.totalorder %s34, 3
      %p575 = por %p573, %p574
      %p576 = scmp.ne.s32.totalorder %s565, %s566
      %p577 = scmp.eq.s32.totalorder %s34, 0
      %p578 = por %p576, %p577
      %p579 = scmp.ne.s32.totalorder %s565, %s566
      %p580 = scmp.eq.s32.totalorder %s35, 3
      %p581 = por %p579, %p580
      %p583 = scmp.ne.s32.totalorder %s566, %s582
      %p584 = scmp.eq.s32.totalorder %s35, 0
      %p585 = por %p583, %p584
      %p586 = scmp.le.s32.totalorder 1, %s29
      %p587 = scmp.lt.s32.totalorder %s29, 5
      %p588 = pnand %p586, %p587
      %p589 = pneg %p588
      // Predicated region
      $region9: #{san_bert_forward.1} parent=5 // pred_check
        _
      $region10: #{san_bert_forward.1} parent=5 // pred_check_branch
        %591 = sbr.rel (%p588) target = $region12
      $region11: #{san_bert_forward.1} parent=5 // pred_region
        %s592 = ssub.s32 %s29, 1
        // Predicated region
        $region13: #{san_bert_forward.1} parent=11 // pred_check
          %p593 = pneg %p114
        $region14: #{san_bert_forward.1} parent=11 // pred_check_branch
          %595 = sbr.rel (%p593) target = $region16
        $region15: #{san_bert_forward.1} parent=11 // pred_region
          _
        $region16: #{san_bert_forward.1} parent=11 // pred_fallthru
          _
        // Predicated region
        $region17: #{san_bert_forward.1} parent=11 // pred_check
          %p596 = pneg %p135
        $region18: #{san_bert_forward.1} parent=11 // pred_check_branch
          %598 = sbr.rel (%p596) target = $region20
        $region19: #{san_bert_forward.1} parent=11 // pred_region
          %s600 = ssub.s32 16, 16
          %601 = vsyncadd [#allocation4], %s600
          %s603 = sshll.u32 [#allocation3], 4
          %s604 = int_to_ptr.vmem [resolvable:$true] %s603
          %606 = dma.hbm_to_vmem [thread:$0]  %s3, 16, %s604, [#allocation4]
        $region20: #{san_bert_forward.1} parent=11 // pred_fallthru
          _
        // Predicated region
        $region21: #{san_bert_forward.1} parent=11 // pred_check
          %p607 = pneg %p156
        $region22: #{san_bert_forward.1} parent=11 // pred_check_branch
          %609 = sbr.rel (%p607) target = $region24
        $region23: #{san_bert_forward.1} parent=11 // pred_region
          %s611 = ssub.s32 16, 16
          %612 = vsyncadd [#allocation6], %s611
          %s614 = sshll.u32 [#allocation5], 4
          %s615 = int_to_ptr.vmem [resolvable:$true] %s614
          %617 = dma.hbm_to_vmem [thread:$0]  %s4, 16, %s615, [#allocation6]
        $region24: #{san_bert_forward.1} parent=11 // pred_fallthru
          _
        // Predicated region
        $region25: #{san_bert_forward.1} parent=11 // pred_check
          %p618 = pneg %p489
        $region26: #{san_bert_forward.1} parent=11 // pred_check_branch
          %620 = sbr.rel (%p618) target = $region28
        $region27: #{san_bert_forward.1} parent=11 // pred_region
          _
        $region28: #{san_bert_forward.1} parent=11 // pred_fallthru
          _
        // Predicated region
        $region29: #{san_bert_forward.1} parent=11 // pred_check
          %p621 = pneg %p510
        $region30: #{san_bert_forward.1} parent=11 // pred_check_branch
          %623 = sbr.rel (%p621) target = $region32
        $region31: #{san_bert_forward.1} parent=11 // pred_region
          _
        $region32: #{san_bert_forward.1} parent=11 // pred_fallthru
          _
        // Predicated region
        $region33: #{san_bert_forward.1} parent=11 // pred_check
          %p624 = pneg %p531
        $region34: #{san_bert_forward.1} parent=11 // pred_check_branch
          %626 = sbr.rel (%p624) target = $region36
        $region35: #{san_bert_forward.1} parent=11 // pred_region
          %s628 = ssub.s32 1024, 1024
          %629 = vsyncadd [#allocation6], %s628
          %s630 = sshll.u32 [#allocation16], 4
          %s631 = int_to_ptr.vmem [resolvable:$true] %s630
          %636 = dma.hbm_to_vmem [thread:$0]  %s19, 1024, %s631, [#allocation6], 64, 64, 4
        $region36: #{san_bert_forward.1} parent=11 // pred_fallthru
          _
        // Predicated region
        $region37: #{san_bert_forward.1} parent=11 // pred_check
          %p637 = pneg %p552
        $region38: #{san_bert_forward.1} parent=11 // pred_check_branch
          %639 = sbr.rel (%p637) target = $region40
        $region39: #{san_bert_forward.1} parent=11 // pred_region
          _
        $region40: #{san_bert_forward.1} parent=11 // pred_fallthru
          _
      $region12: #{san_bert_forward.1} parent=5 // pred_fallthru
        _
      %p640 = scmp.lt.s32.totalorder %s29, 4
      // Predicated region
      $region41: #{san_bert_forward.1} parent=5 // pred_check
        %p641 = pneg %p640
      $region42: #{san_bert_forward.1} parent=5 // pred_check_branch
        %643 = sbr.rel (%p641) target = $region44
      $region43: #{san_bert_forward.1} parent=5 // pred_region
        // Predicated region
        $region45: #{san_bert_forward.1} parent=43 // pred_check
          %p644 = pneg %p61
        $region46: #{san_bert_forward.1} parent=43 // pred_check_branch
          %646 = sbr.rel (%p644) target = $region48
        $region47: #{san_bert_forward.1} parent=43 // pred_region
          %p647 = scmp.lt.s32.totalorder %s36, 1
          %s648 = scalar_select %p647, %s36, 1
          %s649 = smul.addr %s648, 8
          %s650 = scalar_lea.vmem %s0, %s649
        $region48: #{san_bert_forward.1} parent=43 // pred_fallthru
          _
        // Predicated region
        $region49: #{san_bert_forward.1} parent=43 // pred_check
          %p651 = pneg %p87
        $region50: #{san_bert_forward.1} parent=43 // pred_check_branch
          %653 = sbr.rel (%p651) target = $region52
        $region51: #{san_bert_forward.1} parent=43 // pred_region
          %p654 = scmp.lt.s32.totalorder %s36, 1
          %s655 = scalar_select %p654, %s36, 1
          %s656 = smul.addr %s655, 8
          %s657 = scalar_lea.vmem %s1, %s656
        $region52: #{san_bert_forward.1} parent=43 // pred_fallthru
          _
        // Predicated region
        $region53: #{san_bert_forward.1} parent=43 // pred_check
          %p658 = pneg %p176
        $region54: #{san_bert_forward.1} parent=43 // pred_check_branch
          %660 = sbr.rel (%p658) target = $region56
        $region55: #{san_bert_forward.1} parent=43 // pred_region
          %p661 = scmp.lt.s32.totalorder %s37, 1
          %s662 = scalar_select %p661, %s37, 1
          %s663 = smul.addr %s662, 48
          %s664 = smul.addr %s663, 4
          %s665 = scalar_lea.vmem %s5, %s664
        $region56: #{san_bert_forward.1} parent=43 // pred_fallthru
          _
        // Predicated region
        $region57: #{san_bert_forward.1} parent=43 // pred_check
          %p666 = pneg %p202
        $region58: #{san_bert_forward.1} parent=43 // pred_check_branch
          %668 = sbr.rel (%p666) target = $region60
        $region59: #{san_bert_forward.1} parent=43 // pred_region
          %s669 = sand.u32 %s29, 1
          %s670 = scalar_lea.sflag [#allocation4], %s669
          %s671 = sand.u32 %s192, 1
          %s672 = smul.addr %s671, 3
          %s673 = scalar_lea.vmem [#allocation7], %s672
          %s675 = ssub.s32 48, 48
          %676 = vsyncadd %s670, %s675
          %s677 = smul.addr %s37, 3
          %s678 = smul.addr %s677, 16
          %s679 = scalar_lea.hbm %s6, %s678
          %s681 = sshll.u32 %s673, 4
          %s682 = int_to_ptr.vmem [resolvable:$true] %s681
          %684 = dma.hbm_to_vmem [thread:$0]  %s679, 48, %s682, %s670
        $region60: #{san_bert_forward.1} parent=43 // pred_fallthru
          _
        // Predicated region
        $region61: #{san_bert_forward.1} parent=43 // pred_check
          %p685 = pneg %p228
        $region62: #{san_bert_forward.1} parent=43 // pred_check_branch
          %687 = sbr.rel (%p685) target = $region64
        $region63: #{san_bert_forward.1} parent=43 // pred_region
          %p688 = scmp.lt.s32.totalorder %s37, 1
          %s689 = scalar_select %p688, %s37, 1
          %s690 = smul.addr %s689, 16
          %s691 = smul.addr %s690, 4
          %s692 = scalar_lea.vmem %s7, %s691
        $region64: #{san_bert_forward.1} parent=43 // pred_fallthru
          _
        // Predicated region
        $region65: #{san_bert_forward.1} parent=43 // pred_check
          %p693 = pneg %p254
        $region66: #{san_bert_forward.1} parent=43 // pred_check_branch
          %695 = sbr.rel (%p693) target = $region68
        $region67: #{san_bert_forward.1} parent=43 // pred_region
          %p696 = scmp.lt.s32.totalorder %s37, 1
          %s697 = scalar_select %p696, %s37, 1
          %s698 = scalar_lea.vmem %s8, %s697
        $region68: #{san_bert_forward.1} parent=43 // pred_fallthru
          _
        // Predicated region
        $region69: #{san_bert_forward.1} parent=43 // pred_check
          %p699 = pneg %p280
        $region70: #{san_bert_forward.1} parent=43 // pred_check_branch
          %701 = sbr.rel (%p699) target = $region72
        $region71: #{san_bert_forward.1} parent=43 // pred_region
          %s702 = sand.u32 %s29, 1
          %s703 = scalar_lea.sflag [#allocation4], %s702
          %s704 = sand.u32 %s270, 1
          %s705 = scalar_lea.vmem [#allocation8], %s704
          %s707 = ssub.s32 16, 16
          %708 = vsyncadd %s703, %s707
          %s709 = smul.addr %s37, 16
          %s710 = scalar_lea.hbm %s9, %s709
          %s712 = sshll.u32 %s705, 4
          %s713 = int_to_ptr.vmem [resolvable:$true] %s712
          %715 = dma.hbm_to_vmem [thread:$0]  %s710, 16, %s713, %s703
        $region72: #{san_bert_forward.1} parent=43 // pred_fallthru
          _
        // Predicated region
        $region73: #{san_bert_forward.1} parent=43 // pred_check
          %p716 = pneg %p306
        $region74: #{san_bert_forward.1} parent=43 // pred_check_branch
          %718 = sbr.rel (%p716) target = $region76
        $region75: #{san_bert_forward.1} parent=43 // pred_region
          %s719 = sand.u32 %s29, 1
          %s720 = scalar_lea.sflag [#allocation4], %s719
          %s721 = sand.u32 %s296, 1
          %s722 = scalar_lea.vmem [#allocation9], %s721
          %s724 = ssub.s32 16, 16
          %725 = vsyncadd %s720, %s724
          %s726 = smul.addr %s37, 16
          %s727 = scalar_lea.hbm %s10, %s726
          %s729 = sshll.u32 %s722, 4
          %s730 = int_to_ptr.vmem [resolvable:$true] %s729
          %732 = dma.hbm_to_vmem [thread:$0]  %s727, 16, %s730, %s720
        $region76: #{san_bert_forward.1} parent=43 // pred_fallthru
          _
        // Predicated region
        $region77: #{san_bert_forward.1} parent=43 // pred_check
          %p733 = pneg %p332
        $region78: #{san_bert_forward.1} parent=43 // pred_check_branch
          %735 = sbr.rel (%p733) target = $region80
        $region79: #{san_bert_forward.1} parent=43 // pred_region
          %s736 = sand.u32 %s29, 1
          %s737 = scalar_lea.sflag [#allocation4], %s736
          %s738 = sand.u32 %s322, 1
          %s739 = smul.addr %s738, 128
          %s740 = scalar_lea.vmem [#allocation10], %s739
          %s742 = ssub.s32 2048, 2048
          %743 = vsyncadd %s737, %s742
          %s744 = smul.addr %s37, 32
          %s745 = smul.addr %s744, 64
          %s746 = scalar_lea.hbm %s11, %s745
          %s747 = sshll.u32 %s740, 4
          %s748 = int_to_ptr.vmem [resolvable:$true] %s747
          %753 = dma.hbm_to_vmem [thread:$0]  %s746, 2048, %s748, %s737, 128, 128, 8
        $region80: #{san_bert_forward.1} parent=43 // pred_fallthru
          _
        // Predicated region
        $region81: #{san_bert_forward.1} parent=43 // pred_check
          %p754 = pneg %p358
        $region82: #{san_bert_forward.1} parent=43 // pred_check_branch
          %756 = sbr.rel (%p754) target = $region84
        $region83: #{san_bert_forward.1} parent=43 // pred_region
          %s757 = sand.u32 %s29, 1
          %s758 = scalar_lea.sflag [#allocation4], %s757
          %s759 = sand.u32 %s348, 1
          %s760 = smul.addr %s759, 2
          %s761 = scalar_lea.vmem [#allocation11], %s760
          %s763 = ssub.s32 32, 32
          %764 = vsyncadd %s758, %s763
          %s765 = smul.addr %s37, 2
          %s766 = smul.addr %s765, 16
          %s767 = scalar_lea.hbm %s12, %s766
          %s769 = sshll.u32 %s761, 4
          %s770 = int_to_ptr.vmem [resolvable:$true] %s769
          %772 = dma.hbm_to_vmem [thread:$0]  %s767, 32, %s770, %s758
        $region84: #{san_bert_forward.1} parent=43 // pred_fallthru
          _
        // Predicated region
        $region85: #{san_bert_forward.1} parent=43 // pred_check
          %p773 = pneg %p384
        $region86: #{san_bert_forward.1} parent=43 // pred_check_branch
          %775 = sbr.rel (%p773) target = $region88
        $region87: #{san_bert_forward.1} parent=43 // pred_region
          %s776 = sand.u32 %s29, 1
          %s777 = scalar_lea.sflag [#allocation4], %s776
          %s778 = sand.u32 %s374, 1
          %s779 = smul.addr %s778, 128
          %s780 = scalar_lea.vmem [#allocation12], %s779
          %s782 = ssub.s32 2048, 2048
          %783 = vsyncadd %s777, %s782
          %s784 = smul.addr %s37, 32
          %s785 = smul.addr %s784, 64
          %s786 = scalar_lea.hbm %s13, %s785
          %s787 = sshll.u32 %s780, 4
          %s788 = int_to_ptr.vmem [resolvable:$true] %s787
          %793 = dma.hbm_to_vmem [thread:$0]  %s786, 2048, %s788, %s777, 64, 64, 4
        $region88: #{san_bert_forward.1} parent=43 // pred_fallthru
          _
        // Predicated region
        $region89: #{san_bert_forward.1} parent=43 // pred_check
          %p794 = pneg %p410
        $region90: #{san_bert_forward.1} parent=43 // pred_check_branch
          %796 = sbr.rel (%p794) target = $region92
        $region91: #{san_bert_forward.1} parent=43 // pred_region
          %s797 = sand.u32 %s29, 1
          %s798 = scalar_lea.sflag [#allocation4], %s797
          %s799 = sand.u32 %s400, 1
          %s800 = scalar_lea.vmem [#allocation13], %s799
          %s802 = ssub.s32 16, 16
          %803 = vsyncadd %s798, %s802
          %s804 = smul.addr %s37, 16
          %s805 = scalar_lea.hbm %s14, %s804
          %s807 = sshll.u32 %s800, 4
          %s808 = int_to_ptr.vmem [resolvable:$true] %s807
          %810 = dma.hbm_to_vmem [thread:$0]  %s805, 16, %s808, %s798
        $region92: #{san_bert_forward.1} parent=43 // pred_fallthru
          _
        // Predicated region
        $region93: #{san_bert_forward.1} parent=43 // pred_check
          %p811 = pneg %p436
        $region94: #{san_bert_forward.1} parent=43 // pred_check_branch
          %813 = sbr.rel (%p811) target = $region96
        $region95: #{san_bert_forward.1} parent=43 // pred_region
          %s814 = sand.u32 %s29, 1
          %s815 = scalar_lea.sflag [#allocation4], %s814
          %s816 = sand.u32 %s426, 1
          %s817 = scalar_lea.vmem [#allocation14], %s816
          %s819 = ssub.s32 16, 16
          %820 = vsyncadd %s815, %s819
          %s821 = smul.addr %s37, 16
          %s822 = scalar_lea.hbm %s15, %s821
          %s824 = sshll.u32 %s817, 4
          %s825 = int_to_ptr.vmem [resolvable:$true] %s824
          %827 = dma.hbm_to_vmem [thread:$0]  %s822, 16, %s825, %s815
        $region96: #{san_bert_forward.1} parent=43 // pred_fallthru
          _
        // Predicated region
        $region97: #{san_bert_forward.1} parent=43 // pred_check
          %p828 = pneg %p462
        $region98: #{san_bert_forward.1} parent=43 // pred_check_branch
          %830 = sbr.rel (%p828) target = $region100
        $region99: #{san_bert_forward.1} parent=43 // pred_region
          %s831 = sand.u32 %s29, 1
          %s832 = scalar_lea.sflag [#allocation4], %s831
          %s833 = sand.u32 %s452, 1
          %s834 = scalar_lea.vmem [#allocation15], %s833
          %s836 = ssub.s32 16, 16
          %837 = vsyncadd %s832, %s836
          %s838 = smul.addr %s37, 16
          %s839 = scalar_lea.hbm %s16, %s838
          %s841 = sshll.u32 %s834, 4
          %s842 = int_to_ptr.vmem [resolvable:$true] %s841
          %844 = dma.hbm_to_vmem [thread:$0]  %s839, 16, %s842, %s832
        $region100: #{san_bert_forward.1} parent=43 // pred_fallthru
          _
      $region44: #{san_bert_forward.1} parent=5 // pred_fallthru
        _
      %p845 = scmp.le.s32.totalorder 1, %s29
      %p846 = scmp.lt.s32.totalorder %s29, 5
      %p847 = pnand %p845, %p846
      %p848 = pneg %p847
      // Predicated region
      $region101: #{san_bert_forward.1} parent=5 // pred_check
        _
      $region102: #{san_bert_forward.1} parent=5 // pred_check_branch
        %850 = sbr.rel (%p847) target = $region104
      $region103: #{san_bert_forward.1} parent=5 // pred_region
        %s851 = ssub.s32 %s29, 1
        // Predicated region
        $region105: #{san_bert_forward.1} parent=103 // pred_check
          %p852 = pneg %p135
        $region106: #{san_bert_forward.1} parent=103 // pred_check_branch
          %854 = sbr.rel (%p852) target = $region108
        $region107: #{san_bert_forward.1} parent=103 // pred_region
          %855 = dma.done [#allocation4], 16
        $region108: #{san_bert_forward.1} parent=103 // pred_fallthru
          _
        // Predicated region
        $region109: #{san_bert_forward.1} parent=103 // pred_check
          %p856 = pneg %p156
        $region110: #{san_bert_forward.1} parent=103 // pred_check_branch
          %858 = sbr.rel (%p856) target = $region112
        $region111: #{san_bert_forward.1} parent=103 // pred_region
          %859 = dma.done [#allocation6], 16
        $region112: #{san_bert_forward.1} parent=103 // pred_fallthru
          _
        %s860 = sand.u32 %s34, 1
        %s861 = scalar_lea.sflag [#allocation4], %s860
        %s862 = sand.u32 %s195, 1
        %s863 = smul.addr %s862, 3
        %s864 = scalar_lea.vmem [#allocation7], %s863
        // Predicated region
        $region113: #{san_bert_forward.1} parent=103 // pred_check
          %p865 = pneg %p208
        $region114: #{san_bert_forward.1} parent=103 // pred_check_branch
          %867 = sbr.rel (%p865) target = $region116
        $region115: #{san_bert_forward.1} parent=103 // pred_region
          %868 = dma.done %s861, 48
        $region116: #{san_bert_forward.1} parent=103 // pred_fallthru
          _
        %s869 = sand.u32 %s34, 1
        %s870 = scalar_lea.sflag [#allocation4], %s869
        %s871 = sand.u32 %s273, 1
        %s872 = scalar_lea.vmem [#allocation8], %s871
        // Predicated region
        $region117: #{san_bert_forward.1} parent=103 // pred_check
          %p873 = pneg %p286
        $region118: #{san_bert_forward.1} parent=103 // pred_check_branch
          %875 = sbr.rel (%p873) target = $region120
        $region119: #{san_bert_forward.1} parent=103 // pred_region
          %876 = dma.done %s870, 16
        $region120: #{san_bert_forward.1} parent=103 // pred_fallthru
          _
        %s877 = sand.u32 %s34, 1
        %s878 = scalar_lea.sflag [#allocation4], %s877
        %s879 = sand.u32 %s299, 1
        %s880 = scalar_lea.vmem [#allocation9], %s879
        // Predicated region
        $region121: #{san_bert_forward.1} parent=103 // pred_check
          %p881 = pneg %p312
        $region122: #{san_bert_forward.1} parent=103 // pred_check_branch
          %883 = sbr.rel (%p881) target = $region124
        $region123: #{san_bert_forward.1} parent=103 // pred_region
          %884 = dma.done %s878, 16
        $region124: #{san_bert_forward.1} parent=103 // pred_fallthru
          _
        %s885 = sand.u32 %s34, 1
        %s886 = scalar_lea.sflag [#allocation4], %s885
        %s887 = sand.u32 %s325, 1
        %s888 = smul.addr %s887, 128
        %s889 = scalar_lea.vmem [#allocation10], %s888
        // Predicated region
        $region125: #{san_bert_forward.1} parent=103 // pred_check
          %p890 = pneg %p338
        $region126: #{san_bert_forward.1} parent=103 // pred_check_branch
          %892 = sbr.rel (%p890) target = $region128
        $region127: #{san_bert_forward.1} parent=103 // pred_region
          %893 = dma.done %s886, 2048
        $region128: #{san_bert_forward.1} parent=103 // pred_fallthru
          _
        %s894 = sand.u32 %s34, 1
        %s895 = scalar_lea.sflag [#allocation4], %s894
        %s896 = sand.u32 %s351, 1
        %s897 = smul.addr %s896, 2
        %s898 = scalar_lea.vmem [#allocation11], %s897
        // Predicated region
        $region129: #{san_bert_forward.1} parent=103 // pred_check
          %p899 = pneg %p364
        $region130: #{san_bert_forward.1} parent=103 // pred_check_branch
          %901 = sbr.rel (%p899) target = $region132
        $region131: #{san_bert_forward.1} parent=103 // pred_region
          %902 = dma.done %s895, 32
        $region132: #{san_bert_forward.1} parent=103 // pred_fallthru
          _
        %s903 = sand.u32 %s34, 1
        %s904 = scalar_lea.sflag [#allocation4], %s903
        %s905 = sand.u32 %s377, 1
        %s906 = smul.addr %s905, 128
        %s907 = scalar_lea.vmem [#allocation12], %s906
        // Predicated region
        $region133: #{san_bert_forward.1} parent=103 // pred_check
          %p908 = pneg %p390
        $region134: #{san_bert_forward.1} parent=103 // pred_check_branch
          %910 = sbr.rel (%p908) target = $region136
        $region135: #{san_bert_forward.1} parent=103 // pred_region
          %911 = dma.done %s904, 2048
        $region136: #{san_bert_forward.1} parent=103 // pred_fallthru
          _
        %s912 = sand.u32 %s34, 1
        %s913 = scalar_lea.sflag [#allocation4], %s912
        %s914 = sand.u32 %s403, 1
        %s915 = scalar_lea.vmem [#allocation13], %s914
        // Predicated region
        $region137: #{san_bert_forward.1} parent=103 // pred_check
          %p916 = pneg %p416
        $region138: #{san_bert_forward.1} parent=103 // pred_check_branch
          %918 = sbr.rel (%p916) target = $region140
        $region139: #{san_bert_forward.1} parent=103 // pred_region
          %919 = dma.done %s913, 16
        $region140: #{san_bert_forward.1} parent=103 // pred_fallthru
          _
        %s920 = sand.u32 %s34, 1
        %s921 = scalar_lea.sflag [#allocation4], %s920
        %s922 = sand.u32 %s429, 1
        %s923 = scalar_lea.vmem [#allocation14], %s922
        // Predicated region
        $region141: #{san_bert_forward.1} parent=103 // pred_check
          %p924 = pneg %p442
        $region142: #{san_bert_forward.1} parent=103 // pred_check_branch
          %926 = sbr.rel (%p924) target = $region144
        $region143: #{san_bert_forward.1} parent=103 // pred_region
          %927 = dma.done %s921, 16
        $region144: #{san_bert_forward.1} parent=103 // pred_fallthru
          _
        %s928 = sand.u32 %s34, 1
        %s929 = scalar_lea.sflag [#allocation4], %s928
        %s930 = sand.u32 %s455, 1
        %s931 = scalar_lea.vmem [#allocation15], %s930
        // Predicated region
        $region145: #{san_bert_forward.1} parent=103 // pred_check
          %p932 = pneg %p468
        $region146: #{san_bert_forward.1} parent=103 // pred_check_branch
          %934 = sbr.rel (%p932) target = $region148
        $region147: #{san_bert_forward.1} parent=103 // pred_region
          %935 = dma.done %s929, 16
        $region148: #{san_bert_forward.1} parent=103 // pred_fallthru
          _
        // Predicated region
        $region149: #{san_bert_forward.1} parent=103 // pred_check
          %p936 = pneg %p531
        $region150: #{san_bert_forward.1} parent=103 // pred_check_branch
          %938 = sbr.rel (%p936) target = $region152
        $region151: #{san_bert_forward.1} parent=103 // pred_region
          %939 = dma.done [#allocation6], 1024
        $region152: #{san_bert_forward.1} parent=103 // pred_fallthru
          _
        %p940 = scmp.lt.s32.totalorder %s38, 1
        %s941 = scalar_select %p940, %s38, 1
        %s942 = smul.addr %s941, 8
        %s943 = scalar_lea.vmem %s0, %s942
        %p944 = pneg %p67
        %p945 = pneg %p64
        %p946 = scmp.lt.s32.totalorder %s38, 1
        %s947 = scalar_select %p946, %s38, 1
        %s948 = smul.addr %s947, 8
        %s949 = scalar_lea.vmem %s1, %s948
        %p950 = pneg %p93
        %p951 = pneg %p90
        %p952 = pneg %p114
        %p953 = pneg %p111
        %p954 = pneg %p135
        %p955 = pneg %p132
        %p956 = pneg %p156
        %p957 = pneg %p153
        %p958 = scmp.lt.s32.totalorder %s39, 1
        %s959 = scalar_select %p958, %s39, 1
        %s960 = smul.addr %s959, 48
        %s961 = smul.addr %s960, 4
        %s962 = scalar_lea.vmem %s5, %s961
        %p963 = pneg %p182
        %p964 = pneg %p179
        %s965 = sand.u32 %s34, 1
        %s966 = scalar_lea.sflag [#allocation4], %s965
        %s967 = sand.u32 %s195, 1
        %s968 = smul.addr %s967, 3
        %s969 = scalar_lea.vmem [#allocation7], %s968
        %p970 = pneg %p208
        %p971 = pneg %p205
        %p972 = scmp.lt.s32.totalorder %s39, 1
        %s973 = scalar_select %p972, %s39, 1
        %s974 = smul.addr %s973, 16
        %s975 = smul.addr %s974, 4
        %s976 = scalar_lea.vmem %s7, %s975
        %p977 = pneg %p234
        %p978 = pneg %p231
        %p979 = scmp.lt.s32.totalorder %s39, 1
        %s980 = scalar_select %p979, %s39, 1
        %s981 = scalar_lea.vmem %s8, %s980
        %p982 = pneg %p260
        %p983 = pneg %p257
        %s984 = sand.u32 %s34, 1
        %s985 = scalar_lea.sflag [#allocation4], %s984
        %s986 = sand.u32 %s273, 1
        %s987 = scalar_lea.vmem [#allocation8], %s986
        %p988 = pneg %p286
        %p989 = pneg %p283
        %s990 = sand.u32 %s34, 1
        %s991 = scalar_lea.sflag [#allocation4], %s990
        %s992 = sand.u32 %s299, 1
        %s993 = scalar_lea.vmem [#allocation9], %s992
        %p994 = pneg %p312
        %p995 = pneg %p309
        %s996 = sand.u32 %s34, 1
        %s997 = scalar_lea.sflag [#allocation4], %s996
        %s998 = sand.u32 %s325, 1
        %s999 = smul.addr %s998, 128
        %s1000 = scalar_lea.vmem [#allocation10], %s999
        %p1001 = pneg %p338
        %p1002 = pneg %p335
        %s1003 = sand.u32 %s34, 1
        %s1004 = scalar_lea.sflag [#allocation4], %s1003
        %s1005 = sand.u32 %s351, 1
        %s1006 = smul.addr %s1005, 2
        %s1007 = scalar_lea.vmem [#allocation11], %s1006
        %p1008 = pneg %p364
        %p1009 = pneg %p361
        %s1010 = sand.u32 %s34, 1
        %s1011 = scalar_lea.sflag [#allocation4], %s1010
        %s1012 = sand.u32 %s377, 1
        %s1013 = smul.addr %s1012, 128
        %s1014 = scalar_lea.vmem [#allocation12], %s1013
        %p1015 = pneg %p390
        %p1016 = pneg %p387
        %s1017 = sand.u32 %s34, 1
        %s1018 = scalar_lea.sflag [#allocation4], %s1017
        %s1019 = sand.u32 %s403, 1
        %s1020 = scalar_lea.vmem [#allocation13], %s1019
        %p1021 = pneg %p416
        %p1022 = pneg %p413
        %s1023 = sand.u32 %s34, 1
        %s1024 = scalar_lea.sflag [#allocation4], %s1023
        %s1025 = sand.u32 %s429, 1
        %s1026 = scalar_lea.vmem [#allocation14], %s1025
        %p1027 = pneg %p442
        %p1028 = pneg %p439
        %s1029 = sand.u32 %s34, 1
        %s1030 = scalar_lea.sflag [#allocation4], %s1029
        %s1031 = sand.u32 %s455, 1
        %s1032 = scalar_lea.vmem [#allocation15], %s1031
        %p1033 = pneg %p468
        %p1034 = pneg %p465
        %p1035 = pneg %p489
        %p1036 = pneg %p486
        %p1037 = pneg %p510
        %p1038 = pneg %p507
        %p1039 = pneg %p531
        %p1040 = pneg %p528
        %p1041 = pneg %p552
        %p1042 = pneg %p549
        %p1043 = pneg %p578
        %p1044 = pneg %p575
        %p1045 = scmp.lt.s32.totalorder %s38, 1
        %s1046 = scalar_select %p1045, %s38, 1
        %s1047 = smul.addr %s1046, 8
        %s1048 = scalar_lea.vmem %s21, %s1047
        %p1049 = scmp.lt.s32.totalorder %s38, 1
        %s1050 = scalar_select %p1049, %s38, 1
        %s1051 = smul.addr %s1050, 8
        %s1052 = scalar_lea.vmem %s0, %s1051
        %p1053 = scmp.lt.s32.totalorder %s38, 1
        %s1054 = scalar_select %p1053, %s38, 1
        %s1055 = smul.addr %s1054, 8
        %s1056 = scalar_lea.vmem %s1, %s1055
        %p1057 = scmp.lt.s32.totalorder %s39, 1
        %s1058 = scalar_select %p1057, %s39, 1
        %s1059 = smul.addr %s1058, 48
        %s1060 = smul.addr %s1059, 4
        %s1061 = scalar_lea.vmem %s5, %s1060
        %p1062 = scmp.lt.s32.totalorder %s39, 1
        %s1063 = scalar_select %p1062, %s39, 1
        %s1064 = smul.addr %s1063, 16
        %s1065 = smul.addr %s1064, 4
        %s1066 = scalar_lea.vmem %s7, %s1065
        %p1067 = scmp.lt.s32.totalorder %s39, 1
        %s1068 = scalar_select %p1067, %s39, 1
        %s1069 = scalar_lea.vmem %s8, %s1068
        %p1070 = scmp.lt.s32.totalorder %s38, 1
        %s1071 = scalar_select %p1070, %s38, 1
        %s1072 = smul.addr %s1071, 8
        %s1073 = scalar_lea.vmem %s21, %s1072
        %p1075 = scmp.eq.s32.totalorder %s39, 0
        // Predicated region
        $region153: #{san_bert_forward.1} parent=103 // pred_check
          %p1076 = pneg %p1075
        $region154: #{san_bert_forward.1} parent=103 // pred_check_branch
          %1078 = sbr.rel (%p1076) target = $region156
        $region155: #{san_bert_forward.1} parent=103 // pred_region
          %v1079 = vld [vmem:[%s1052] sm:$0xff]
          %v1080 = vld [vmem:[#allocation3] sm:$0x1]
          %v1081 = vld [vmem:[#allocation5] sm:$0x1]
          %1082 = vadd.xlane.f32.xlu0 %v1079
          %v1083 = vpop.xlane.xlu0 %1082
          %v1084 = vrcp.pop 128.0
          %v1085 = vmul.f32 %v1083, %v1084
          %v1086 = vsub.f32 %v1079, %v1085
          %v1087 = vmul.f32 %v1086, %v1086
          %1088 = vadd.xlane.f32.xlu0 %v1087
          %v1089 = vpop.xlane.xlu0 %1088
          %v1090 = vmul.f32 %v1089, %v1084
          %v1091 = vadd.f32 %v1090, 1e-12
          %v1092 = vrsqrt.pop %v1091
          %v1093 = vmul.f32 %v1086, %v1092
          %v1095 = vlaneseq
          %v1096 = vshrl.u32 %v1095, 7
          %v1097 = vsub.s32 0, %v1096
          %v1098 = vrot.slane %v1080, %v1097
          %v1100 = vmul.f32 %v1093, %v1098
          %v1102 = vlaneseq
          %v1103 = vshrl.u32 %v1102, 7
          %v1104 = vsub.s32 0, %v1103
          %v1105 = vrot.slane %v1081, %v1104
          %v1107 = vadd.f32 %v1100, %v1105
          %1108 = vst [vmem:[#allocation2] sm:$0xff] %v1107
        $region156: #{san_bert_forward.1} parent=103 // pred_fallthru
          _
        %v1109 = vld [vmem:[#allocation2] sm:$0xff]
        %v1110 = vpack.c.bf16 %v1109, %v1109
        %v1111 = vld [vmem:[%s1061] sm:$0xff]
        %v1112 = vld [vmem:[%s1061 + $0x8] sm:$0xf]
        %v1113 = vld [vmem:[%s1061 + $0xc] sm:$0xff]
        %v1114 = vld [vmem:[%s1061 + $0x14] sm:$0xf]
        %v1115 = vld [vmem:[%s1061 + $0x18] sm:$0xff]
        %v1116 = vld [vmem:[%s1061 + $0x20] sm:$0xf]
        %v1117 = vld [vmem:[%s1061 + $0x24] sm:$0xff]
        %v1118 = vld [vmem:[%s1061 + $0x2c] sm:$0xf]
        %v1119 = vld [vmem:[%s1061 + $0x30] sm:$0xff]
        %v1120 = vld [vmem:[%s1061 + $0x38] sm:$0xf]
        %v1121 = vld [vmem:[%s1061 + $0x3c] sm:$0xff]
        %v1122 = vld [vmem:[%s1061 + $0x44] sm:$0xf]
        %v1123 = vld [vmem:[%s1061 + $0x48] sm:$0xff]
        %v1124 = vld [vmem:[%s1061 + $0x50] sm:$0xf]
        %v1125 = vld [vmem:[%s1061 + $0x54] sm:$0xff]
        %v1126 = vld [vmem:[%s1061 + $0x5c] sm:$0xf]
        %v1127 = vld [vmem:[%s1061 + $0x60] sm:$0xff]
        %v1128 = vld [vmem:[%s1061 + $0x68] sm:$0xf]
        %v1129 = vld [vmem:[%s1061 + $0x6c] sm:$0xff]
        %v1130 = vld [vmem:[%s1061 + $0x74] sm:$0xf]
        %v1131 = vld [vmem:[%s1061 + $0x78] sm:$0xff]
        %v1132 = vld [vmem:[%s1061 + $0x80] sm:$0xf]
        %v1133 = vld [vmem:[%s1061 + $0x84] sm:$0xff]
        %v1134 = vld [vmem:[%s1061 + $0x8c] sm:$0xf]
        %v1135 = vld [vmem:[%s1061 + $0x90] sm:$0xff]
        %v1136 = vld [vmem:[%s1061 + $0x98] sm:$0xf]
        %v1137 = vld [vmem:[%s1061 + $0x9c] sm:$0xff]
        %v1138 = vld [vmem:[%s1061 + $0xa4] sm:$0xf]
        %v1139 = vld [vmem:[%s1061 + $0xa8] sm:$0xff]
        %v1140 = vld [vmem:[%s1061 + $0xb0] sm:$0xf]
        %v1141 = vld [vmem:[%s1061 + $0xb4] sm:$0xff]
        %v1142 = vld [vmem:[%s1061 + $0xbc] sm:$0xf]
        %v1143 = vld [vmem:[%s864] sm:$0x7]
        %v1145 = vlaneseq
        %v1146 = vshrl.u32 %v1145, 7
        %v1147 = vsub.s32 0, %v1146
        %v1148 = vrot.slane %v1143, %v1147
        %v1149 = vlaneseq
        %v1150 = vshrl.u32 %v1149, 7
        %v1151 = vsub.s32 1, %v1150
        %v1152 = vrot.slane %v1143, %v1151
        %v1153 = vlaneseq
        %v1154 = vshrl.u32 %v1153, 7
        %v1155 = vsub.s32 2, %v1154
        %v1156 = vrot.slane %v1143, %v1155
        %v1192 = vunpack.c.l.b16 %v1111
        %v1193 = vunpack.c.h.b16 %v1111
        %v1194 = vunpack.c.l.b16 %v1112
        %v1195 = vunpack.c.l.b16 %v1113
        %v1196 = vunpack.c.h.b16 %v1113
        %v1197 = vunpack.c.l.b16 %v1114
        %v1198 = vunpack.c.l.b16 %v1115
        %v1199 = vunpack.c.h.b16 %v1115
        %v1200 = vunpack.c.l.b16 %v1116
        %v1201 = vunpack.c.l.b16 %v1117
        %v1202 = vunpack.c.h.b16 %v1117
        %v1203 = vunpack.c.l.b16 %v1118
        %v1204 = vunpack.c.l.b16 %v1119
        %v1205 = vunpack.c.h.b16 %v1119
        %v1206 = vunpack.c.l.b16 %v1120
        %v1207 = vunpack.c.l.b16 %v1121
        %v1208 = vunpack.c.h.b16 %v1121
        %v1209 = vunpack.c.l.b16 %v1122
        %v1210 = vunpack.c.l.b16 %v1123
        %v1211 = vunpack.c.h.b16 %v1123
        %v1212 = vunpack.c.l.b16 %v1124
        %v1213 = vunpack.c.l.b16 %v1125
        %v1214 = vunpack.c.h.b16 %v1125
        %v1215 = vunpack.c.l.b16 %v1126
        %v1216 = vunpack.c.l.b16 %v1127
        %v1217 = vunpack.c.h.b16 %v1127
        %v1218 = vunpack.c.l.b16 %v1128
        %v1219 = vunpack.c.l.b16 %v1129
        %v1220 = vunpack.c.h.b16 %v1129
        %v1221 = vunpack.c.l.b16 %v1130
        %v1222 = vunpack.c.l.b16 %v1131
        %v1223 = vunpack.c.h.b16 %v1131
        %v1224 = vunpack.c.l.b16 %v1132
        %v1225 = vunpack.c.l.b16 %v1133
        %v1226 = vunpack.c.h.b16 %v1133
        %v1227 = vunpack.c.l.b16 %v1134
        %v1228 = vunpack.c.l.b16 %v1135
        %v1229 = vunpack.c.h.b16 %v1135
        %v1230 = vunpack.c.l.b16 %v1136
        %v1231 = vunpack.c.l.b16 %v1137
        %v1232 = vunpack.c.h.b16 %v1137
        %v1233 = vunpack.c.l.b16 %v1138
        %v1234 = vunpack.c.l.b16 %v1139
        %v1235 = vunpack.c.h.b16 %v1139
        %v1236 = vunpack.c.l.b16 %v1140
        %v1237 = vunpack.c.l.b16 %v1141
        %v1238 = vunpack.c.h.b16 %v1141
        %v1239 = vunpack.c.l.b16 %v1142
        %v1240 = vpack.c.b16 %v1195, %v1192
        %v1241 = vpack.c.b16 %v1196, %v1193
        %v1242 = vpack.c.b16 %v1197, %v1194
        %v1243 = vpack.c.b16 %v1201, %v1198
        %v1244 = vpack.c.b16 %v1202, %v1199
        %v1245 = vpack.c.b16 %v1203, %v1200
        %v1246 = vpack.c.b16 %v1207, %v1204
        %v1247 = vpack.c.b16 %v1208, %v1205
        %v1248 = vpack.c.b16 %v1209, %v1206
        %v1249 = vpack.c.b16 %v1213, %v1210
        %v1250 = vpack.c.b16 %v1214, %v1211
        %v1251 = vpack.c.b16 %v1215, %v1212
        %v1252 = vpack.c.b16 %v1219, %v1216
        %v1253 = vpack.c.b16 %v1220, %v1217
        %v1254 = vpack.c.b16 %v1221, %v1218
        %v1255 = vpack.c.b16 %v1225, %v1222
        %v1256 = vpack.c.b16 %v1226, %v1223
        %v1257 = vpack.c.b16 %v1227, %v1224
        %v1258 = vpack.c.b16 %v1231, %v1228
        %v1259 = vpack.c.b16 %v1232, %v1229
        %v1260 = vpack.c.b16 %v1233, %v1230
        %v1261 = vpack.c.b16 %v1237, %v1234
        %v1262 = vpack.c.b16 %v1238, %v1235
        %v1263 = vpack.c.b16 %v1239, %v1236
        %1288 = vmatprep.subr.bf16.mxu0 %v1241
        %1289 = vmatpush1.bf16.msra.mxu0 %v1240
        %1290 = vmatprep.subr.bf16.mxu0 %v1244
        %1291 = vmatpush1.bf16.msra.mxu0 %v1243
        %1292 = vmatprep.subr.bf16.mxu0 %v1247
        %1293 = vmatpush1.bf16.msra.mxu0 %v1246
        %1294 = vmatprep.subr.bf16.mxu0 %v1250
        %1295 = vmatpush1.bf16.msra.mxu0 %v1249
        %1296 = vmatprep.subr.bf16.mxu0 %v1253
        %1297 = vmatpush1.bf16.msra.mxu0 %v1252
        %1298 = vmatprep.subr.bf16.mxu0 %v1256
        %1299 = vmatpush1.bf16.msra.mxu0 %v1255
        %1300 = vmatprep.subr.bf16.mxu0 %v1259
        %1301 = vmatpush1.bf16.msra.mxu0 %v1258
        %1302 = vmatprep.subr.bf16.mxu0 %v1262
        %1303 = vmatpush1.bf16.msra.mxu0 %v1261
        %1304 = vmatprep.subr.bf16.mxu0 0
        %1305 = vmatpush1.bf16.msra.mxu0 0
        %1306 = vmatprep.subr.bf16.mxu0 0
        %1307 = vmatpush1.bf16.msra.mxu0 0
        %1308 = vmatprep.subr.bf16.mxu0 0
        %1309 = vmatpush1.bf16.msra.mxu0 0
        %1310 = vmatprep.subr.bf16.mxu0 0
        %1311 = vmatpush1.bf16.msra.mxu0 0
        %1312 = vmatprep.subr.bf16.mxu0 0
        %1313 = vmatpush1.bf16.msra.mxu0 0
        %1314 = vmatprep.subr.bf16.mxu0 0
        %1315 = vmatpush1.bf16.msra.mxu0 0
        %1316 = vmatprep.subr.bf16.mxu0 0
        %1317 = vmatpush1.bf16.msra.mxu0 0
        %1318 = vmatprep.subr.bf16.mxu0 0
        %1319 = vmatpush1.bf16.msra.mxu0 0
        %1320 = vmatprep.mubr.bf16.mxu0 0
        %1321 = vmatmul.mubr.bf16.gmra.mrb[0].mxu0 %v1110
        %v1322 = vpop.f32.mrb[0].mxu0
        %v1323 = vadd.f32 %v1148, %v1322
        %v1324 = vpop.f32.mrb[0].mxu0
        %v1325 = vadd.f32 %v1152, %v1324
        %v1326 = vpop.f32.mrb[0].mxu0
        %v1327 = vpop.f32.mrb[0].mxu0
        %1328 = vdwg.mxu0
        %1329 = vmatprep.subr.bf16.mxu0 0
        %1330 = vmatpush1.bf16.msra.mxu0 %v1242
        %1331 = vmatprep.subr.bf16.mxu0 0
        %1332 = vmatpush1.bf16.msra.mxu0 %v1245
        %1333 = vmatprep.subr.bf16.mxu0 0
        %1334 = vmatpush1.bf16.msra.mxu0 %v1248
        %1335 = vmatprep.subr.bf16.mxu0 0
        %1336 = vmatpush1.bf16.msra.mxu0 %v1251
        %1337 = vmatprep.subr.bf16.mxu0 0
        %1338 = vmatpush1.bf16.msra.mxu0 %v1254
        %1339 = vmatprep.subr.bf16.mxu0 0
        %1340 = vmatpush1.bf16.msra.mxu0 %v1257
        %1341 = vmatprep.subr.bf16.mxu0 0
        %1342 = vmatpush1.bf16.msra.mxu0 %v1260
        %1343 = vmatprep.subr.bf16.mxu0 0
        %1344 = vmatpush1.bf16.msra.mxu0 %v1263
        %1345 = vmatprep.subr.bf16.mxu0 0
        %1346 = vmatpush1.bf16.msra.mxu0 0
        %1347 = vmatprep.subr.bf16.mxu0 0
        %1348 = vmatpush1.bf16.msra.mxu0 0
        %1349 = vmatprep.subr.bf16.mxu0 0
        %1350 = vmatpush1.bf16.msra.mxu0 0
        %1351 = vmatprep.subr.bf16.mxu0 0
        %1352 = vmatpush1.bf16.msra.mxu0 0
        %1353 = vmatprep.subr.bf16.mxu0 0
        %1354 = vmatpush1.bf16.msra.mxu0 0
        %1355 = vmatprep.subr.bf16.mxu0 0
        %1356 = vmatpush1.bf16.msra.mxu0 0
        %1357 = vmatprep.subr.bf16.mxu0 0
        %1358 = vmatpush1.bf16.msra.mxu0 0
        %1359 = vmatprep.subr.bf16.mxu0 0
        %1360 = vmatpush1.bf16.msra.mxu0 0
        %1361 = vmatprep.mubr.bf16.mxu0 0
        %1362 = vmatmul.mubr.bf16.gmra.mrb[0].mxu0 %v1110
        %v1363 = vpop.f32.mrb[0].mxu0
        %v1364 = vadd.f32 %v1156, %v1363
        %v1365 = vpop.f32.mrb[0].mxu0
        %v1366 = vpop.f32.mrb[0].mxu0
        %v1367 = vpop.f32.mrb[0].mxu0
        %1368 = vdwg.mxu0
        %v1369 = vld [vmem:[%s2] sm:$0xff]
        %v1370 = vld [vmem:[%s2 + $0x8] sm:$0xff]
        %v1371 = vld [vmem:[%s2 + $0x10] sm:$0xff]
        %v1372 = vld [vmem:[%s2 + $0x18] sm:$0xff]
        %v1373 = vmul.f32 %v1325, %v1369
        %v1374 = vmul.f32 %v1325, %v1370
        %v1375 = vmul.f32 %v1325, %v1371
        %v1376 = vmul.f32 %v1325, %v1372
        %v1377 = vpack.c.bf16 %v1374, %v1373
        %v1378 = vpack.c.bf16 %v1376, %v1375
        %v1379 = vmul.f32 %v1364, %v1369
        %v1380 = vmul.f32 %v1364, %v1370
        %v1381 = vmul.f32 %v1364, %v1371
        %v1382 = vmul.f32 %v1364, %v1372
        %v1383 = vpack.c.bf16 %v1380, %v1379
        %v1384 = vpack.c.bf16 %v1382, %v1381
        %v1385 = vpack.c.bf16 %v1323, %v1323
        %1386 = vmatprep.subr.bf16.mxu0 0
        %1387 = vmatpush1.bf16.xpose.msra.mxu0 %v1377
        %1388 = vmatprep.subr.bf16.mxu0 0
        %1389 = vmatpush1.bf16.xpose.msra.mxu0 %v1378
        %1390 = vmatprep.subr.bf16.mxu0 0
        %1391 = vmatpush1.bf16.xpose.msra.mxu0 0
        %1392 = vmatprep.subr.bf16.mxu0 0
        %1393 = vmatpush1.bf16.xpose.msra.mxu0 0
        %1394 = vmatprep.subr.bf16.mxu0 0
        %1395 = vmatpush1.bf16.xpose.msra.mxu0 0
        %1396 = vmatprep.subr.bf16.mxu0 0
        %1397 = vmatpush1.bf16.xpose.msra.mxu0 0
        %1398 = vmatprep.subr.bf16.mxu0 0
        %1399 = vmatpush1.bf16.xpose.msra.mxu0 0
        %1400 = vmatprep.subr.bf16.mxu0 0
        %1401 = vmatpush1.bf16.xpose.msra.mxu0 0
        %1402 = vmatprep.subr.bf16.mxu0 0
        %1403 = vmatpush1.bf16.xpose.msra.mxu0 0
        %1404 = vmatprep.subr.bf16.mxu0 0
        %1405 = vmatpush1.bf16.xpose.msra.mxu0 0
        %1406 = vmatprep.subr.bf16.mxu0 0
        %1407 = vmatpush1.bf16.xpose.msra.mxu0 0
        %1408 = vmatprep.subr.bf16.mxu0 0
        %1409 = vmatpush1.bf16.xpose.msra.mxu0 0
        %1410 = vmatprep.subr.bf16.mxu0 0
        %1411 = vmatpush1.bf16.xpose.msra.mxu0 0
        %1412 = vmatprep.subr.bf16.mxu0 0
        %1413 = vmatpush1.bf16.xpose.msra.mxu0 0
        %1414 = vmatprep.subr.bf16.mxu0 0
        %1415 = vmatpush1.bf16.xpose.msra.mxu0 0
        %1416 = vmatprep.subr.bf16.mxu0 0
        %1417 = vmatpush1.bf16.xpose.msra.mxu0 0
        %1418 = vmatprep.mubr.bf16.mxu0 0
        %1419 = vmatmul.mubr.bf16.gmra.mrb[0].mxu0 %v1385
        %v1420 = vpop.f32.mrb[0].mxu0
        %v1421 = vadd.f32 0.0, %v1420
        %v1422 = vpop.f32.mrb[0].mxu0
        %v1423 = vpop.f32.mrb[0].mxu0
        %v1424 = vpop.f32.mrb[0].mxu0
        %1425 = vdwg.mxu0
        %v1426 = vmul.f32 %v1421, 0.17677669
        %v1427 = vld [vmem:[%s1056] sm:$0xff]
        %v1428 = vadd.f32 %v1426, %v1427
        %vm1429 = vcmask 261120
        %v1430 = vsel %vm1429, %v1428, -inf
        %1431 = vmax.xlane.f32.xlu0 %v1430
        %v1432 = vpop.xlane.xlu0 %1431
        %v1433 = vsub.f32 %v1428, %v1432
        %v1434 = vmul.f32 %v1433, 1.442695
        %v1435 = vpow.pop %v1434
        %v1437 = vsel %vm1429, %v1435, 0
        %1439 = vmatprep.subr.mxu0 0.0
        %1440 = vmatpush1.msra.mxu0 %v1369
        %1441 = vmatprep.subr.mxu0 0.0
        %1442 = vmatpush1.msra.mxu0 %v1370
        %1443 = vmatprep.subr.mxu0 0.0
        %1444 = vmatpush1.msra.mxu0 %v1371
        %1445 = vmatprep.subr.mxu0 0.0
        %1446 = vmatpush1.msra.mxu0 %v1372
        %1447 = vmatprep.subr.mxu0 0.0
        %1448 = vmatpush1.msra.mxu0 0.0
        %1449 = vmatprep.subr.mxu0 0.0
        %1450 = vmatpush1.msra.mxu0 0.0
        %1451 = vmatprep.subr.mxu0 0.0
        %1452 = vmatpush1.msra.mxu0 0.0
        %1453 = vmatprep.subr.mxu0 0.0
        %1454 = vmatpush1.msra.mxu0 0.0
        %1455 = vmatprep.subr.mxu0 0.0
        %1456 = vmatpush1.msra.mxu0 0.0
        %1457 = vmatprep.subr.mxu0 0.0
        %1458 = vmatpush1.msra.mxu0 0.0
        %1459 = vmatprep.subr.mxu0 0.0
        %1460 = vmatpush1.msra.mxu0 0.0
        %1461 = vmatprep.subr.mxu0 0.0
        %1462 = vmatpush1.msra.mxu0 0.0
        %1463 = vmatprep.subr.mxu0 0.0
        %1464 = vmatpush1.msra.mxu0 0.0
        %1465 = vmatprep.subr.mxu0 0.0
        %1466 = vmatpush1.msra.mxu0 0.0
        %1467 = vmatprep.subr.mxu0 0.0
        %1468 = vmatpush1.msra.mxu0 0.0
        %1469 = vmatprep.subr.mxu0 0.0
        %1470 = vmatpush1.msra.mxu0 0.0
        %1471 = vmatprep.subr.mxu0 0.0
        %1472 = vmatpush1.msra.mxu0 0.0
        %1473 = vmatprep.subr.mxu0 0.0
        %1474 = vmatpush1.msra.mxu0 0.0
        %1475 = vmatprep.subr.mxu0 0.0
        %1476 = vmatpush1.msra.mxu0 0.0
        %1477 = vmatprep.subr.mxu0 0.0
        %1478 = vmatpush1.msra.mxu0 0.0
        %1479 = vmatprep.subr.mxu0 0.0
        %1480 = vmatpush1.msra.mxu0 0.0
        %1481 = vmatprep.subr.mxu0 0.0
        %1482 = vmatpush1.msra.mxu0 0.0
        %1483 = vmatprep.subr.mxu0 0.0
        %1484 = vmatpush1.msra.mxu0 0.0
        %1485 = vmatprep.subr.mxu0 0.0
        %1486 = vmatpush1.msra.mxu0 0.0
        %1487 = vmatprep.subr.mxu0 0.0
        %1488 = vmatpush1.msra.mxu0 0.0
        %1489 = vmatprep.subr.mxu0 0.0
        %1490 = vmatpush1.msra.mxu0 0.0
        %1491 = vmatprep.subr.mxu0 0.0
        %1492 = vmatpush1.msra.mxu0 0.0
        %1493 = vmatprep.subr.mxu0 0.0
        %1494 = vmatpush1.msra.mxu0 0.0
        %1495 = vmatprep.subr.mxu0 0.0
        %1496 = vmatpush1.msra.mxu0 0.0
        %1497 = vmatprep.subr.mxu0 0.0
        %1498 = vmatpush1.msra.mxu0 0.0
        %1499 = vmatprep.subr.mxu0 0.0
        %1500 = vmatpush1.msra.mxu0 0.0
        %1501 = vmatprep.subr.mxu0 0.0
        %1502 = vmatpush1.msra.mxu0 0.0
        %1503 = vmatprep.mubr.f32.mxu0 0.0
        %1504 = vmatmul.mubr.f32.gmra.mrb[0].mxu0 %v1437
        %v1505 = vpop.f32.mrb[0].mxu0
        %v1506 = vadd.f32 0.0, %v1505
        %v1507 = vpop.f32.mrb[0].mxu0
        %1508 = vdwg.mxu0
        %v1509 = vpack.c.bf16 %v1435, %v1435
        %v1511 = vsel %vm1429, %v1509, 0
        %1513 = vmatprep.subr.bf16.mxu0 0
        %1514 = vmatpush1.bf16.msra.mxu0 %v1383
        %1515 = vmatprep.subr.bf16.mxu0 0
        %1516 = vmatpush1.bf16.msra.mxu0 %v1384
        %1517 = vmatprep.subr.bf16.mxu0 0
        %1518 = vmatpush1.bf16.msra.mxu0 0
        %1519 = vmatprep.subr.bf16.mxu0 0
        %1520 = vmatpush1.bf16.msra.mxu0 0
        %1521 = vmatprep.subr.bf16.mxu0 0
        %1522 = vmatpush1.bf16.msra.mxu0 0
        %1523 = vmatprep.subr.bf16.mxu0 0
        %1524 = vmatpush1.bf16.msra.mxu0 0
        %1525 = vmatprep.subr.bf16.mxu0 0
        %1526 = vmatpush1.bf16.msra.mxu0 0
        %1527 = vmatprep.subr.bf16.mxu0 0
        %1528 = vmatpush1.bf16.msra.mxu0 0
        %1529 = vmatprep.subr.bf16.mxu0 0
        %1530 = vmatpush1.bf16.msra.mxu0 0
        %1531 = vmatprep.subr.bf16.mxu0 0
        %1532 = vmatpush1.bf16.msra.mxu0 0
        %1533 = vmatprep.subr.bf16.mxu0 0
        %1534 = vmatpush1.bf16.msra.mxu0 0
        %1535 = vmatprep.subr.bf16.mxu0 0
        %1536 = vmatpush1.bf16.msra.mxu0 0
        %1537 = vmatprep.subr.bf16.mxu0 0
        %1538 = vmatpush1.bf16.msra.mxu0 0
        %1539 = vmatprep.subr.bf16.mxu0 0
        %1540 = vmatpush1.bf16.msra.mxu0 0
        %1541 = vmatprep.subr.bf16.mxu0 0
        %1542 = vmatpush1.bf16.msra.mxu0 0
        %1543 = vmatprep.subr.bf16.mxu0 0
        %1544 = vmatpush1.bf16.msra.mxu0 0
        %1545 = vmatprep.mubr.bf16.mxu0 0
        %1546 = vmatmul.mubr.bf16.gmra.mrb[0].mxu0 %v1511
        %v1547 = vpop.f32.mrb[0].mxu0
        %v1548 = vadd.f32 0.0, %v1547
        %v1549 = vpop.f32.mrb[0].mxu0
        %v1550 = vpop.f32.mrb[0].mxu0
        %v1551 = vpop.f32.mrb[0].mxu0
        %1552 = vdwg.mxu0
        %v1553 = vrcp.pop %v1506
        %v1554 = vmul.f32 %v1548, %v1553
        %v1555 = vpack.c.bf16 %v1554, %v1554
        %v1556 = vld [vmem:[%s1066] sm:$0xf]
        %v1557 = vld [vmem:[%s1066 + $0x4] sm:$0xf]
        %v1558 = vld [vmem:[%s1066 + $0x8] sm:$0xf]
        %v1559 = vld [vmem:[%s1066 + $0xc] sm:$0xf]
        %v1560 = vld [vmem:[%s1066 + $0x10] sm:$0xf]
        %v1561 = vld [vmem:[%s1066 + $0x14] sm:$0xf]
        %v1562 = vld [vmem:[%s1066 + $0x18] sm:$0xf]
        %v1563 = vld [vmem:[%s1066 + $0x1c] sm:$0xf]
        %v1564 = vld [vmem:[%s1066 + $0x20] sm:$0xf]
        %v1565 = vld [vmem:[%s1066 + $0x24] sm:$0xf]
        %v1566 = vld [vmem:[%s1066 + $0x28] sm:$0xf]
        %v1567 = vld [vmem:[%s1066 + $0x2c] sm:$0xf]
        %v1568 = vld [vmem:[%s1066 + $0x30] sm:$0xf]
        %v1569 = vld [vmem:[%s1066 + $0x34] sm:$0xf]
        %v1570 = vld [vmem:[%s1066 + $0x38] sm:$0xf]
        %v1571 = vld [vmem:[%s1066 + $0x3c] sm:$0xf]
        %v1572 = vld [vmem:[%s1069] sm:$0x1]
        %v1574 = vlaneseq
        %v1575 = vshrl.u32 %v1574, 7
        %v1576 = vsub.s32 0, %v1575
        %v1577 = vrot.slane %v1572, %v1576
        %v1595 = vunpack.c.l.b16 %v1556
        %v1596 = vunpack.c.l.b16 %v1557
        %v1597 = vunpack.c.l.b16 %v1558
        %v1598 = vunpack.c.l.b16 %v1559
        %v1599 = vunpack.c.l.b16 %v1560
        %v1600 = vunpack.c.l.b16 %v1561
        %v1601 = vunpack.c.l.b16 %v1562
        %v1602 = vunpack.c.l.b16 %v1563
        %v1603 = vunpack.c.l.b16 %v1564
        %v1604 = vunpack.c.l.b16 %v1565
        %v1605 = vunpack.c.l.b16 %v1566
        %v1606 = vunpack.c.l.b16 %v1567
        %v1607 = vunpack.c.l.b16 %v1568
        %v1608 = vunpack.c.l.b16 %v1569
        %v1609 = vunpack.c.l.b16 %v1570
        %v1610 = vunpack.c.l.b16 %v1571
        %v1611 = vpack.c.b16 %v1596, %v1595
        %v1612 = vpack.c.b16 %v1598, %v1597
        %v1613 = vpack.c.b16 %v1600, %v1599
        %v1614 = vpack.c.b16 %v1602, %v1601
        %v1615 = vpack.c.b16 %v1604, %v1603
        %v1616 = vpack.c.b16 %v1606, %v1605
        %v1617 = vpack.c.b16 %v1608, %v1607
        %v1618 = vpack.c.b16 %v1610, %v1609
        %1627 = vmatprep.subr.bf16.mxu0 0
        %1628 = vmatpush1.bf16.msra.mxu0 %v1611
        %1629 = vmatprep.subr.bf16.mxu0 0
        %1630 = vmatpush1.bf16.msra.mxu0 %v1612
        %1631 = vmatprep.subr.bf16.mxu0 0
        %1632 = vmatpush1.bf16.msra.mxu0 %v1613
        %1633 = vmatprep.subr.bf16.mxu0 0
        %1634 = vmatpush1.bf16.msra.mxu0 %v1614
        %1635 = vmatprep.subr.bf16.mxu0 0
        %1636 = vmatpush1.bf16.msra.mxu0 %v1615
        %1637 = vmatprep.subr.bf16.mxu0 0
        %1638 = vmatpush1.bf16.msra.mxu0 %v1616
        %1639 = vmatprep.subr.bf16.mxu0 0
        %1640 = vmatpush1.bf16.msra.mxu0 %v1617
        %1641 = vmatprep.subr.bf16.mxu0 0
        %1642 = vmatpush1.bf16.msra.mxu0 %v1618
        %1643 = vmatprep.subr.bf16.mxu0 0
        %1644 = vmatpush1.bf16.msra.mxu0 0
        %1645 = vmatprep.subr.bf16.mxu0 0
        %1646 = vmatpush1.bf16.msra.mxu0 0
        %1647 = vmatprep.subr.bf16.mxu0 0
        %1648 = vmatpush1.bf16.msra.mxu0 0
        %1649 = vmatprep.subr.bf16.mxu0 0
        %1650 = vmatpush1.bf16.msra.mxu0 0
        %1651 = vmatprep.subr.bf16.mxu0 0
        %1652 = vmatpush1.bf16.msra.mxu0 0
        %1653 = vmatprep.subr.bf16.mxu0 0
        %1654 = vmatpush1.bf16.msra.mxu0 0
        %1655 = vmatprep.subr.bf16.mxu0 0
        %1656 = vmatpush1.bf16.msra.mxu0 0
        %1657 = vmatprep.subr.bf16.mxu0 0
        %1658 = vmatpush1.bf16.msra.mxu0 0
        %1659 = vmatprep.mubr.bf16.mxu0 0
        %1660 = vmatmul.mubr.bf16.gmra.mrb[0].mxu0 %v1555
        %v1661 = vpop.f32.mrb[0].mxu0
        %v1662 = vadd.f32 %v1577, %v1661
        %v1663 = vpop.f32.mrb[0].mxu0
        %v1664 = vpop.f32.mrb[0].mxu0
        %v1665 = vpop.f32.mrb[0].mxu0
        %1666 = vdwg.mxu0
        %v1667 = vadd.f32 %v1662, %v1109
        %v1668 = vld [vmem:[%s872] sm:$0x1]
        %v1669 = vld [vmem:[%s880] sm:$0x1]
        %1670 = vadd.xlane.f32.xlu0 %v1667
        %v1671 = vpop.xlane.xlu0 %1670
        %v1672 = vrcp.pop 128.0
        %v1673 = vmul.f32 %v1671, %v1672
        %v1674 = vsub.f32 %v1667, %v1673
        %v1675 = vmul.f32 %v1674, %v1674
        %1676 = vadd.xlane.f32.xlu0 %v1675
        %v1677 = vpop.xlane.xlu0 %1676
        %v1678 = vmul.f32 %v1677, %v1672
        %v1679 = vadd.f32 %v1678, 1e-12
        %v1680 = vrsqrt.pop %v1679
        %v1681 = vmul.f32 %v1674, %v1680
        %v1683 = vlaneseq
        %v1684 = vshrl.u32 %v1683, 7
        %v1685 = vsub.s32 0, %v1684
        %v1686 = vrot.slane %v1668, %v1685
        %v1688 = vmul.f32 %v1681, %v1686
        %v1690 = vlaneseq
        %v1691 = vshrl.u32 %v1690, 7
        %v1692 = vsub.s32 0, %v1691
        %v1693 = vrot.slane %v1669, %v1692
        %v1695 = vadd.f32 %v1688, %v1693
        %v1696 = vpack.c.bf16 %v1695, %v1695
        %v1697 = vld [vmem:[%s889] sm:$0xff]
        %v1698 = vld [vmem:[%s889 + $0x8] sm:$0xff]
        %v1699 = vld [vmem:[%s889 + $0x10] sm:$0xff]
        %v1700 = vld [vmem:[%s889 + $0x18] sm:$0xff]
        %v1701 = vld [vmem:[%s889 + $0x20] sm:$0xff]
        %v1702 = vld [vmem:[%s889 + $0x28] sm:$0xff]
        %v1703 = vld [vmem:[%s889 + $0x30] sm:$0xff]
        %v1704 = vld [vmem:[%s889 + $0x38] sm:$0xff]
        %v1705 = vld [vmem:[%s889 + $0x40] sm:$0xff]
        %v1706 = vld [vmem:[%s889 + $0x48] sm:$0xff]
        %v1707 = vld [vmem:[%s889 + $0x50] sm:$0xff]
        %v1708 = vld [vmem:[%s889 + $0x58] sm:$0xff]
        %v1709 = vld [vmem:[%s889 + $0x60] sm:$0xff]
        %v1710 = vld [vmem:[%s889 + $0x68] sm:$0xff]
        %v1711 = vld [vmem:[%s889 + $0x70] sm:$0xff]
        %v1712 = vld [vmem:[%s889 + $0x78] sm:$0xff]
        %v1713 = vld [vmem:[%s898] sm:$0x3]
        %v1715 = vlaneseq
        %v1716 = vshrl.u32 %v1715, 7
        %v1717 = vsub.s32 0, %v1716
        %v1718 = vrot.slane %v1713, %v1717
        %v1719 = vlaneseq
        %v1720 = vshrl.u32 %v1719, 7
        %v1721 = vsub.s32 1, %v1720
        %v1722 = vrot.slane %v1713, %v1721
        %v1741 = vunpack.c.l.b16 %v1697
        %v1742 = vunpack.c.h.b16 %v1697
        %v1743 = vunpack.c.l.b16 %v1698
        %v1744 = vunpack.c.h.b16 %v1698
        %v1745 = vunpack.c.l.b16 %v1699
        %v1746 = vunpack.c.h.b16 %v1699
        %v1747 = vunpack.c.l.b16 %v1700
        %v1748 = vunpack.c.h.b16 %v1700
        %v1749 = vunpack.c.l.b16 %v1701
        %v1750 = vunpack.c.h.b16 %v1701
        %v1751 = vunpack.c.l.b16 %v1702
        %v1752 = vunpack.c.h.b16 %v1702
        %v1753 = vunpack.c.l.b16 %v1703
        %v1754 = vunpack.c.h.b16 %v1703
        %v1755 = vunpack.c.l.b16 %v1704
        %v1756 = vunpack.c.h.b16 %v1704
        %v1757 = vunpack.c.l.b16 %v1705
        %v1758 = vunpack.c.h.b16 %v1705
        %v1759 = vunpack.c.l.b16 %v1706
        %v1760 = vunpack.c.h.b16 %v1706
        %v1761 = vunpack.c.l.b16 %v1707
        %v1762 = vunpack.c.h.b16 %v1707
        %v1763 = vunpack.c.l.b16 %v1708
        %v1764 = vunpack.c.h.b16 %v1708
        %v1765 = vunpack.c.l.b16 %v1709
        %v1766 = vunpack.c.h.b16 %v1709
        %v1767 = vunpack.c.l.b16 %v1710
        %v1768 = vunpack.c.h.b16 %v1710
        %v1769 = vunpack.c.l.b16 %v1711
        %v1770 = vunpack.c.h.b16 %v1711
        %v1771 = vunpack.c.l.b16 %v1712
        %v1772 = vunpack.c.h.b16 %v1712
        %v1773 = vpack.c.b16 %v1743, %v1741
        %v1774 = vpack.c.b16 %v1744, %v1742
        %v1775 = vpack.c.b16 %v1747, %v1745
        %v1776 = vpack.c.b16 %v1748, %v1746
        %v1777 = vpack.c.b16 %v1751, %v1749
        %v1778 = vpack.c.b16 %v1752, %v1750
        %v1779 = vpack.c.b16 %v1755, %v1753
        %v1780 = vpack.c.b16 %v1756, %v1754
        %v1781 = vpack.c.b16 %v1759, %v1757
        %v1782 = vpack.c.b16 %v1760, %v1758
        %v1783 = vpack.c.b16 %v1763, %v1761
        %v1784 = vpack.c.b16 %v1764, %v1762
        %v1785 = vpack.c.b16 %v1767, %v1765
        %v1786 = vpack.c.b16 %v1768, %v1766
        %v1787 = vpack.c.b16 %v1771, %v1769
        %v1788 = vpack.c.b16 %v1772, %v1770
        %1805 = vmatprep.subr.bf16.mxu0 %v1774
        %1806 = vmatpush1.bf16.msra.mxu0 %v1773
        %1807 = vmatprep.subr.bf16.mxu0 %v1776
        %1808 = vmatpush1.bf16.msra.mxu0 %v1775
        %1809 = vmatprep.subr.bf16.mxu0 %v1778
        %1810 = vmatpush1.bf16.msra.mxu0 %v1777
        %1811 = vmatprep.subr.bf16.mxu0 %v1780
        %1812 = vmatpush1.bf16.msra.mxu0 %v1779
        %1813 = vmatprep.subr.bf16.mxu0 %v1782
        %1814 = vmatpush1.bf16.msra.mxu0 %v1781
        %1815 = vmatprep.subr.bf16.mxu0 %v1784
        %1816 = vmatpush1.bf16.msra.mxu0 %v1783
        %1817 = vmatprep.subr.bf16.mxu0 %v1786
        %1818 = vmatpush1.bf16.msra.mxu0 %v1785
        %1819 = vmatprep.subr.bf16.mxu0 %v1788
        %1820 = vmatpush1.bf16.msra.mxu0 %v1787
        %1821 = vmatprep.subr.bf16.mxu0 0
        %1822 = vmatpush1.bf16.msra.mxu0 0
        %1823 = vmatprep.subr.bf16.mxu0 0
        %1824 = vmatpush1.bf16.msra.mxu0 0
        %1825 = vmatprep.subr.bf16.mxu0 0
        %1826 = vmatpush1.bf16.msra.mxu0 0
        %1827 = vmatprep.subr.bf16.mxu0 0
        %1828 = vmatpush1.bf16.msra.mxu0 0
        %1829 = vmatprep.subr.bf16.mxu0 0
        %1830 = vmatpush1.bf16.msra.mxu0 0
        %1831 = vmatprep.subr.bf16.mxu0 0
        %1832 = vmatpush1.bf16.msra.mxu0 0
        %1833 = vmatprep.subr.bf16.mxu0 0
        %1834 = vmatpush1.bf16.msra.mxu0 0
        %1835 = vmatprep.subr.bf16.mxu0 0
        %1836 = vmatpush1.bf16.msra.mxu0 0
        %1837 = vmatprep.mubr.bf16.mxu0 0
        %1838 = vmatmul.mubr.bf16.gmra.mrb[0].mxu0 %v1696
        %v1839 = vpop.f32.mrb[0].mxu0
        %v1840 = vadd.f32 %v1718, %v1839
        %v1841 = vpop.f32.mrb[0].mxu0
        %v1842 = vadd.f32 %v1722, %v1841
        %v1843 = vpop.f32.mrb[0].mxu0
        %v1844 = vpop.f32.mrb[0].mxu0
        %1845 = vdwg.mxu0
        %v1846 = vmul.f32 %v1840, 0.5
        %v1847 = vmul.f32 %v1842, 0.5
        %v1848 = vmul.f32 %v1840, 0.044715
        %v1849 = vmul.f32 %v1842, 0.044715
        %v1850 = vmul.f32 %v1848, %v1840
        %v1851 = vmul.f32 %v1849, %v1842
        %v1852 = vmul.f32 %v1850, %v1840
        %v1853 = vmul.f32 %v1851, %v1842
        %v1854 = vadd.f32 %v1840, %v1852
        %v1855 = vadd.f32 %v1842, %v1853
        %v1856 = vmul.f32 %v1854, 0.7978846
        %v1857 = vmul.f32 %v1855, 0.7978846
        %v1858 = vtanh.pop %v1856
        %v1859 = vtanh.pop %v1857
        %v1860 = vadd.f32 %v1858, 1.0
        %v1861 = vadd.f32 %v1859, 1.0
        %v1862 = vmul.f32 %v1846, %v1860
        %v1863 = vmul.f32 %v1847, %v1861
        %v1864 = vpack.c.bf16 %v1862, %v1862
        %v1865 = vpack.c.bf16 %v1863, %v1863
        %v1866 = vld [vmem:[%s907] sm:$0xf]
        %v1867 = vld [vmem:[%s907 + $0x4] sm:$0xf]
        %v1868 = vld [vmem:[%s907 + $0x8] sm:$0xf]
        %v1869 = vld [vmem:[%s907 + $0xc] sm:$0xf]
        %v1870 = vld [vmem:[%s907 + $0x10] sm:$0xf]
        %v1871 = vld [vmem:[%s907 + $0x14] sm:$0xf]
        %v1872 = vld [vmem:[%s907 + $0x18] sm:$0xf]
        %v1873 = vld [vmem:[%s907 + $0x1c] sm:$0xf]
        %v1874 = vld [vmem:[%s907 + $0x20] sm:$0xf]
        %v1875 = vld [vmem:[%s907 + $0x24] sm:$0xf]
        %v1876 = vld [vmem:[%s907 + $0x28] sm:$0xf]
        %v1877 = vld [vmem:[%s907 + $0x2c] sm:$0xf]
        %v1878 = vld [vmem:[%s907 + $0x30] sm:$0xf]
        %v1879 = vld [vmem:[%s907 + $0x34] sm:$0xf]
        %v1880 = vld [vmem:[%s907 + $0x38] sm:$0xf]
        %v1881 = vld [vmem:[%s907 + $0x3c] sm:$0xf]
        %v1882 = vld [vmem:[%s907 + $0x40] sm:$0xf]
        %v1883 = vld [vmem:[%s907 + $0x44] sm:$0xf]
        %v1884 = vld [vmem:[%s907 + $0x48] sm:$0xf]
        %v1885 = vld [vmem:[%s907 + $0x4c] sm:$0xf]
        %v1886 = vld [vmem:[%s907 + $0x50] sm:$0xf]
        %v1887 = vld [vmem:[%s907 + $0x54] sm:$0xf]
        %v1888 = vld [vmem:[%s907 + $0x58] sm:$0xf]
        %v1889 = vld [vmem:[%s907 + $0x5c] sm:$0xf]
        %v1890 = vld [vmem:[%s907 + $0x60] sm:$0xf]
        %v1891 = vld [vmem:[%s907 + $0x64] sm:$0xf]
        %v1892 = vld [vmem:[%s907 + $0x68] sm:$0xf]
        %v1893 = vld [vmem:[%s907 + $0x6c] sm:$0xf]
        %v1894 = vld [vmem:[%s907 + $0x70] sm:$0xf]
        %v1895 = vld [vmem:[%s907 + $0x74] sm:$0xf]
        %v1896 = vld [vmem:[%s907 + $0x78] sm:$0xf]
        %v1897 = vld [vmem:[%s907 + $0x7c] sm:$0xf]
        %v1898 = vld [vmem:[%s915] sm:$0x1]
        %v1900 = vlaneseq
        %v1901 = vshrl.u32 %v1900, 7
        %v1902 = vsub.s32 0, %v1901
        %v1903 = vrot.slane %v1898, %v1902
        %v1937 = vunpack.c.l.b16 %v1866
        %v1938 = vunpack.c.l.b16 %v1867
        %v1939 = vunpack.c.l.b16 %v1868
        %v1940 = vunpack.c.l.b16 %v1869
        %v1941 = vunpack.c.l.b16 %v1870
        %v1942 = vunpack.c.l.b16 %v1871
        %v1943 = vunpack.c.l.b16 %v1872
        %v1944 = vunpack.c.l.b16 %v1873
        %v1945 = vunpack.c.l.b16 %v1874
        %v1946 = vunpack.c.l.b16 %v1875
        %v1947 = vunpack.c.l.b16 %v1876
        %v1948 = vunpack.c.l.b16 %v1877
        %v1949 = vunpack.c.l.b16 %v1878
        %v1950 = vunpack.c.l.b16 %v1879
        %v1951 = vunpack.c.l.b16 %v1880
        %v1952 = vunpack.c.l.b16 %v1881
        %v1953 = vunpack.c.l.b16 %v1882
        %v1954 = vunpack.c.l.b16 %v1883
        %v1955 = vunpack.c.l.b16 %v1884
        %v1956 = vunpack.c.l.b16 %v1885
        %v1957 = vunpack.c.l.b16 %v1886
        %v1958 = vunpack.c.l.b16 %v1887
        %v1959 = vunpack.c.l.b16 %v1888
        %v1960 = vunpack.c.l.b16 %v1889
        %v1961 = vunpack.c.l.b16 %v1890
        %v1962 = vunpack.c.l.b16 %v1891
        %v1963 = vunpack.c.l.b16 %v1892
        %v1964 = vunpack.c.l.b16 %v1893
        %v1965 = vunpack.c.l.b16 %v1894
        %v1966 = vunpack.c.l.b16 %v1895
        %v1967 = vunpack.c.l.b16 %v1896
        %v1968 = vunpack.c.l.b16 %v1897
        %v1969 = vpack.c.b16 %v1938, %v1937
        %v1970 = vpack.c.b16 %v1940, %v1939
        %v1971 = vpack.c.b16 %v1942, %v1941
        %v1972 = vpack.c.b16 %v1944, %v1943
        %v1973 = vpack.c.b16 %v1946, %v1945
        %v1974 = vpack.c.b16 %v1948, %v1947
        %v1975 = vpack.c.b16 %v1950, %v1949
        %v1976 = vpack.c.b16 %v1952, %v1951
        %v1977 = vpack.c.b16 %v1954, %v1953
        %v1978 = vpack.c.b16 %v1956, %v1955
        %v1979 = vpack.c.b16 %v1958, %v1957
        %v1980 = vpack.c.b16 %v1960, %v1959
        %v1981 = vpack.c.b16 %v1962, %v1961
        %v1982 = vpack.c.b16 %v1964, %v1963
        %v1983 = vpack.c.b16 %v1966, %v1965
        %v1984 = vpack.c.b16 %v1968, %v1967
        %2001 = vmatprep.subr.bf16.mxu0 0
        %2002 = vmatpush1.bf16.msra.mxu0 %v1969
        %2003 = vmatprep.subr.bf16.mxu0 0
        %2004 = vmatpush1.bf16.msra.mxu0 %v1970
        %2005 = vmatprep.subr.bf16.mxu0 0
        %2006 = vmatpush1.bf16.msra.mxu0 %v1971
        %2007 = vmatprep.subr.bf16.mxu0 0
        %2008 = vmatpush1.bf16.msra.mxu0 %v1972
        %2009 = vmatprep.subr.bf16.mxu0 0
        %2010 = vmatpush1.bf16.msra.mxu0 %v1973
        %2011 = vmatprep.subr.bf16.mxu0 0
        %2012 = vmatpush1.bf16.msra.mxu0 %v1974
        %2013 = vmatprep.subr.bf16.mxu0 0
        %2014 = vmatpush1.bf16.msra.mxu0 %v1975
        %2015 = vmatprep.subr.bf16.mxu0 0
        %2016 = vmatpush1.bf16.msra.mxu0 %v1976
        %2017 = vmatprep.subr.bf16.mxu0 0
        %2018 = vmatpush1.bf16.msra.mxu0 %v1977
        %2019 = vmatprep.subr.bf16.mxu0 0
        %2020 = vmatpush1.bf16.msra.mxu0 %v1978
        %2021 = vmatprep.subr.bf16.mxu0 0
        %2022 = vmatpush1.bf16.msra.mxu0 %v1979
        %2023 = vmatprep.subr.bf16.mxu0 0
        %2024 = vmatpush1.bf16.msra.mxu0 %v1980
        %2025 = vmatprep.subr.bf16.mxu0 0
        %2026 = vmatpush1.bf16.msra.mxu0 %v1981
        %2027 = vmatprep.subr.bf16.mxu0 0
        %2028 = vmatpush1.bf16.msra.mxu0 %v1982
        %2029 = vmatprep.subr.bf16.mxu0 0
        %2030 = vmatpush1.bf16.msra.mxu0 %v1983
        %2031 = vmatprep.subr.bf16.mxu0 0
        %2032 = vmatpush1.bf16.msra.mxu0 %v1984
        %2033 = vmatprep.mubr.bf16.mxu0 %v1865
        %2034 = vmatmul.mubr.bf16.gmra.mrb[0].mxu0 %v1864
        %v2035 = vpop.f32.mrb[0].mxu0
        %v2036 = vadd.f32 %v1903, %v2035
        %v2037 = vpop.f32.mrb[0].mxu0
        %v2038 = vpop.f32.mrb[0].mxu0
        %v2039 = vpop.f32.mrb[0].mxu0
        %2040 = vdwg.mxu0
        %v2041 = vadd.f32 %v2036, %v1695
        %v2042 = vld [vmem:[%s923] sm:$0x1]
        %v2043 = vld [vmem:[%s931] sm:$0x1]
        %2044 = vadd.xlane.f32.xlu0 %v2041
        %v2045 = vpop.xlane.xlu0 %2044
        %v2046 = vmul.f32 %v2045, %v1672
        %v2047 = vsub.f32 %v2041, %v2046
        %v2048 = vmul.f32 %v2047, %v2047
        %2049 = vadd.xlane.f32.xlu0 %v2048
        %v2050 = vpop.xlane.xlu0 %2049
        %v2051 = vmul.f32 %v2050, %v1672
        %v2052 = vadd.f32 %v2051, 1e-12
        %v2053 = vrsqrt.pop %v2052
        %v2054 = vmul.f32 %v2047, %v2053
        %v2056 = vlaneseq
        %v2057 = vshrl.u32 %v2056, 7
        %v2058 = vsub.s32 0, %v2057
        %v2059 = vrot.slane %v2042, %v2058
        %v2061 = vmul.f32 %v2054, %v2059
        %v2063 = vlaneseq
        %v2064 = vshrl.u32 %v2063, 7
        %v2065 = vsub.s32 0, %v2064
        %v2066 = vrot.slane %v2043, %v2065
        %v2068 = vadd.f32 %v2061, %v2066
        %2069 = vst [vmem:[#allocation2] sm:$0xff] %v2068
        %p2070 = scmp.eq.s32.totalorder %s39, 1
        // Predicated region
        $region157: #{san_bert_forward.1} parent=103 // pred_check
          %p2071 = pneg %p2070
        $region158: #{san_bert_forward.1} parent=103 // pred_check_branch
          %2073 = sbr.rel (%p2071) target = $region160
        $region159: #{san_bert_forward.1} parent=103 // pred_region
          %v2074 = vpack.c.bf16 %v2068, %v2068
          %v2075 = vld [vmem:[%s17] sm:$0xf]
          %v2076 = vld [vmem:[%s17 + $0x4] sm:$0xf]
          %v2077 = vld [vmem:[%s17 + $0x8] sm:$0xf]
          %v2078 = vld [vmem:[%s17 + $0xc] sm:$0xf]
          %v2079 = vld [vmem:[%s17 + $0x10] sm:$0xf]
          %v2080 = vld [vmem:[%s17 + $0x14] sm:$0xf]
          %v2081 = vld [vmem:[%s17 + $0x18] sm:$0xf]
          %v2082 = vld [vmem:[%s17 + $0x1c] sm:$0xf]
          %v2083 = vld [vmem:[%s17 + $0x20] sm:$0xf]
          %v2084 = vld [vmem:[%s17 + $0x24] sm:$0xf]
          %v2085 = vld [vmem:[%s17 + $0x28] sm:$0xf]
          %v2086 = vld [vmem:[%s17 + $0x2c] sm:$0xf]
          %v2087 = vld [vmem:[%s17 + $0x30] sm:$0xf]
          %v2088 = vld [vmem:[%s17 + $0x34] sm:$0xf]
          %v2089 = vld [vmem:[%s17 + $0x38] sm:$0xf]
          %v2090 = vld [vmem:[%s17 + $0x3c] sm:$0xf]
          %v2091 = vld [vmem:[%s18] sm:$0x1]
          %v2108 = vunpack.c.l.b16 %v2075
          %v2109 = vunpack.c.l.b16 %v2076
          %v2110 = vunpack.c.l.b16 %v2077
          %v2111 = vunpack.c.l.b16 %v2078
          %v2112 = vunpack.c.l.b16 %v2079
          %v2113 = vunpack.c.l.b16 %v2080
          %v2114 = vunpack.c.l.b16 %v2081
          %v2115 = vunpack.c.l.b16 %v2082
          %v2116 = vunpack.c.l.b16 %v2083
          %v2117 = vunpack.c.l.b16 %v2084
          %v2118 = vunpack.c.l.b16 %v2085
          %v2119 = vunpack.c.l.b16 %v2086
          %v2120 = vunpack.c.l.b16 %v2087
          %v2121 = vunpack.c.l.b16 %v2088
          %v2122 = vunpack.c.l.b16 %v2089
          %v2123 = vunpack.c.l.b16 %v2090
          %v2124 = vpack.c.b16 %v2109, %v2108
          %v2125 = vpack.c.b16 %v2111, %v2110
          %v2126 = vpack.c.b16 %v2113, %v2112
          %v2127 = vpack.c.b16 %v2115, %v2114
          %v2128 = vpack.c.b16 %v2117, %v2116
          %v2129 = vpack.c.b16 %v2119, %v2118
          %v2130 = vpack.c.b16 %v2121, %v2120
          %v2131 = vpack.c.b16 %v2123, %v2122
          %2140 = vmatprep.subr.bf16.mxu0 0
          %2141 = vmatpush1.bf16.msra.mxu0 %v2124
          %2142 = vmatprep.subr.bf16.mxu0 0
          %2143 = vmatpush1.bf16.msra.mxu0 %v2125
          %2144 = vmatprep.subr.bf16.mxu0 0
          %2145 = vmatpush1.bf16.msra.mxu0 %v2126
          %2146 = vmatprep.subr.bf16.mxu0 0
          %2147 = vmatpush1.bf16.msra.mxu0 %v2127
          %2148 = vmatprep.subr.bf16.mxu0 0
          %2149 = vmatpush1.bf16.msra.mxu0 %v2128
          %2150 = vmatprep.subr.bf16.mxu0 0
          %2151 = vmatpush1.bf16.msra.mxu0 %v2129
          %2152 = vmatprep.subr.bf16.mxu0 0
          %2153 = vmatpush1.bf16.msra.mxu0 %v2130
          %2154 = vmatprep.subr.bf16.mxu0 0
          %2155 = vmatpush1.bf16.msra.mxu0 %v2131
          %2156 = vmatprep.subr.bf16.mxu0 0
          %2157 = vmatpush1.bf16.msra.mxu0 0
          %2158 = vmatprep.subr.bf16.mxu0 0
          %2159 = vmatpush1.bf16.msra.mxu0 0
          %2160 = vmatprep.subr.bf16.mxu0 0
          %2161 = vmatpush1.bf16.msra.mxu0 0
          %2162 = vmatprep.subr.bf16.mxu0 0
          %2163 = vmatpush1.bf16.msra.mxu0 0
          %2164 = vmatprep.subr.bf16.mxu0 0
          %2165 = vmatpush1.bf16.msra.mxu0 0
          %2166 = vmatprep.subr.bf16.mxu0 0
          %2167 = vmatpush1.bf16.msra.mxu0 0
          %2168 = vmatprep.subr.bf16.mxu0 0
          %2169 = vmatpush1.bf16.msra.mxu0 0
          %2170 = vmatprep.subr.bf16.mxu0 0
          %2171 = vmatpush1.bf16.msra.mxu0 0
          %2172 = vmatprep.mubr.bf16.mxu0 0
          %2173 = vmatmul.mubr.bf16.gmra.mrb[0].mxu0 %v2074
          %v2174 = vpop.f32.mrb[0].mxu0
          %v2175 = vadd.f32 %v2091, %v2174
          %v2176 = vpop.f32.mrb[0].mxu0
          %v2177 = vpop.f32.mrb[0].mxu0
          %v2178 = vpop.f32.mrb[0].mxu0
          %2179 = vdwg.mxu0
          %v2180 = vtanh.pop %v2175
          %v2181 = vpack.c.bf16 %v2180, %v2180
          %v2182 = vld [vmem:[#allocation16] sm:$0xf]
          %v2183 = vld [vmem:[#allocation16 + $0x4] sm:$0xf]
          %v2184 = vld [vmem:[#allocation16 + $0x8] sm:$0xf]
          %v2185 = vld [vmem:[#allocation16 + $0xc] sm:$0xf]
          %v2186 = vld [vmem:[#allocation16 + $0x10] sm:$0xf]
          %v2187 = vld [vmem:[#allocation16 + $0x14] sm:$0xf]
          %v2188 = vld [vmem:[#allocation16 + $0x18] sm:$0xf]
          %v2189 = vld [vmem:[#allocation16 + $0x1c] sm:$0xf]
          %v2190 = vld [vmem:[#allocation16 + $0x20] sm:$0xf]
          %v2191 = vld [vmem:[#allocation16 + $0x24] sm:$0xf]
          %v2192 = vld [vmem:[#allocation16 + $0x28] sm:$0xf]
          %v2193 = vld [vmem:[#allocation16 + $0x2c] sm:$0xf]
          %v2194 = vld [vmem:[#allocation16 + $0x30] sm:$0xf]
          %v2195 = vld [vmem:[#allocation16 + $0x34] sm:$0xf]
          %v2196 = vld [vmem:[#allocation16 + $0x38] sm:$0xf]
          %v2197 = vld [vmem:[#allocation16 + $0x3c] sm:$0xf]
          %v2198 = vld [vmem:[%s20] sm:$0x1]
          %v2215 = vunpack.c.l.b16 %v2182
          %v2216 = vunpack.c.l.b16 %v2183
          %v2217 = vunpack.c.l.b16 %v2184
          %v2218 = vunpack.c.l.b16 %v2185
          %v2219 = vunpack.c.l.b16 %v2186
          %v2220 = vunpack.c.l.b16 %v2187
          %v2221 = vunpack.c.l.b16 %v2188
          %v2222 = vunpack.c.l.b16 %v2189
          %v2223 = vunpack.c.l.b16 %v2190
          %v2224 = vunpack.c.l.b16 %v2191
          %v2225 = vunpack.c.l.b16 %v2192
          %v2226 = vunpack.c.l.b16 %v2193
          %v2227 = vunpack.c.l.b16 %v2194
          %v2228 = vunpack.c.l.b16 %v2195
          %v2229 = vunpack.c.l.b16 %v2196
          %v2230 = vunpack.c.l.b16 %v2197
          %v2231 = vpack.c.b16 %v2216, %v2215
          %v2232 = vpack.c.b16 %v2218, %v2217
          %v2233 = vpack.c.b16 %v2220, %v2219
          %v2234 = vpack.c.b16 %v2222, %v2221
          %v2235 = vpack.c.b16 %v2224, %v2223
          %v2236 = vpack.c.b16 %v2226, %v2225
          %v2237 = vpack.c.b16 %v2228, %v2227
          %v2238 = vpack.c.b16 %v2230, %v2229
          %2247 = vmatprep.subr.bf16.mxu0 0
          %2248 = vmatpush1.bf16.msra.mxu0 %v2231
          %2249 = vmatprep.subr.bf16.mxu0 0
          %2250 = vmatpush1.bf16.msra.mxu0 %v2232
          %2251 = vmatprep.subr.bf16.mxu0 0
          %2252 = vmatpush1.bf16.msra.mxu0 %v2233
          %2253 = vmatprep.subr.bf16.mxu0 0
          %2254 = vmatpush1.bf16.msra.mxu0 %v2234
          %2255 = vmatprep.subr.bf16.mxu0 0
          %2256 = vmatpush1.bf16.msra.mxu0 %v2235
          %2257 = vmatprep.subr.bf16.mxu0 0
          %2258 = vmatpush1.bf16.msra.mxu0 %v2236
          %2259 = vmatprep.subr.bf16.mxu0 0
          %2260 = vmatpush1.bf16.msra.mxu0 %v2237
          %2261 = vmatprep.subr.bf16.mxu0 0
          %2262 = vmatpush1.bf16.msra.mxu0 %v2238
          %2263 = vmatprep.subr.bf16.mxu0 0
          %2264 = vmatpush1.bf16.msra.mxu0 0
          %2265 = vmatprep.subr.bf16.mxu0 0
          %2266 = vmatpush1.bf16.msra.mxu0 0
          %2267 = vmatprep.subr.bf16.mxu0 0
          %2268 = vmatpush1.bf16.msra.mxu0 0
          %2269 = vmatprep.subr.bf16.mxu0 0
          %2270 = vmatpush1.bf16.msra.mxu0 0
          %2271 = vmatprep.subr.bf16.mxu0 0
          %2272 = vmatpush1.bf16.msra.mxu0 0
          %2273 = vmatprep.subr.bf16.mxu0 0
          %2274 = vmatpush1.bf16.msra.mxu0 0
          %2275 = vmatprep.subr.bf16.mxu0 0
          %2276 = vmatpush1.bf16.msra.mxu0 0
          %2277 = vmatprep.subr.bf16.mxu0 0
          %2278 = vmatpush1.bf16.msra.mxu0 0
          %2279 = vmatprep.mubr.bf16.mxu0 0
          %2280 = vmatmul.mubr.bf16.gmra.mrb[0].mxu0 %v2181
          %v2281 = vpop.f32.mrb[0].mxu0
          %v2282 = vadd.f32 %v2198, %v2281
          %v2283 = vpop.f32.mrb[0].mxu0
          %v2284 = vpop.f32.mrb[0].mxu0
          %v2285 = vpop.f32.mrb[0].mxu0
          %2286 = vdwg.mxu0
          %v2287 = vlaneseq
          %v2288 = vshrl.u32 %v2287, 7
          %v2289 = vsub.s32 0, %v2288
          %v2290 = vrot.slane %v2282, %v2289
          %2291 = vst [vmem:[%s1073] sm:$0xff] %v2290
        $region160: #{san_bert_forward.1} parent=103 // pred_fallthru
          _
        %p2292 = scmp.lt.s32.totalorder %s38, 1
        %s2293 = scalar_select %p2292, %s38, 1
        %s2294 = smul.addr %s2293, 8
        %s2295 = scalar_lea.vmem %s21, %s2294
        // Predicated region
        $region161: #{san_bert_forward.1} parent=103 // pred_check
          %p2296 = pneg %p575
        $region162: #{san_bert_forward.1} parent=103 // pred_check_branch
          %2298 = sbr.rel (%p2296) target = $region164
        $region163: #{san_bert_forward.1} parent=103 // pred_region
          _
        $region164: #{san_bert_forward.1} parent=103 // pred_fallthru
          _
      $region104: #{san_bert_forward.1} parent=5 // pred_fallthru
        _
      %p2299 = scmp.le.s32.totalorder 2, %s29
      // Predicated region
      $region165: #{san_bert_forward.1} parent=5 // pred_check
        %p2300 = pneg %p2299
      $region166: #{san_bert_forward.1} parent=5 // pred_check_branch
        %2302 = sbr.rel (%p2300) target = $region168
      $region167: #{san_bert_forward.1} parent=5 // pred_region
        %s2303 = ssub.s32 %s29, 2
        // Predicated region
        $region169: #{san_bert_forward.1} parent=167 // pred_check
          %p2304 = pneg %p581
        $region170: #{san_bert_forward.1} parent=167 // pred_check_branch
          %2306 = sbr.rel (%p2304) target = $region172
        $region171: #{san_bert_forward.1} parent=167 // pred_region
          %p2307 = scmp.lt.s32.totalorder %s40, 1
          %s2308 = scalar_select %p2307, %s40, 1
          %s2309 = smul.addr %s2308, 8
          %s2310 = scalar_lea.vmem %s21, %s2309
        $region172: #{san_bert_forward.1} parent=167 // pred_fallthru
          _
      $region168: #{san_bert_forward.1} parent=5 // pred_fallthru
        _
    $region6: #{san_bert_forward.1} parent=1 // loop_footer
      %s33 = sadd.s32 1, %s29
    $region7: #{san_bert_forward.1} parent=1 // loop_footer_branch
      %28 = sbr.rel target = $region3
    $region8: #{san_bert_forward.1} parent=1 // loop_exit
      _
    %2311 = vsyncpa [#allocation4], 1
    %s2312 = scalar_lea.sflag [#allocation4], 1
    %2313 = vsyncpa %s2312, 1
    %2314 = vsyncpa [#allocation6], 1

</llo_original>
